<compile_context>
chip_gen: v7x
topology: tpu7x:2x2x1
jax: 0.10.0
libtpu: 0.0.40
codegen_flags: <defaults>
</compile_context>

<pallas_src>
import jax
import jax.numpy as jnp
from jax import lax
from jax.experimental import pallas as pl
from jax.experimental.pallas import tpu as pltpu

LANE = 128                 # lane width: every feature dim padded to a multiple
TROW = 512                 # row tile (edges / nodes per grid step)
VMEM_LIMIT = 64 * 1024 * 1024   # explicit scoped-VMEM limit (usage is a few MB)


# ----------------------------- small helpers ---------------------------------

def _pad_to(n, m):
    return ((n + m - 1) // m) * m


def _pad2(a, rows, cols):
    r, c = a.shape
    return jnp.pad(a, ((0, rows - r), (0, cols - c)))


def _pad_rows(a, rows):
    return jnp.pad(a, ((0, rows - a.shape[0]), (0, 0)))


def _gelu(x):
    # TODO(synk): tanh-approximate GELU; torch nn.GELU default is exact erf.
    c = jnp.float32(0.7978845608028654)  # sqrt(2/pi)
    return 0.5 * x * (1.0 + jnp.tanh(c * (x + 0.044715 * x * x * x)))


# -------------------------- filter encoder kernel ----------------------------

def _filter_kernel(bas_ref, w1_ref, b1_ref, w2_ref, b2_ref, o_ref):
    h = jnp.dot(bas_ref[...], w1_ref[...],
                preferred_element_type=jnp.float32) + b1_ref[...]
    h = _gelu(h)
    o = jnp.dot(h.astype(jnp.bfloat16), w2_ref[...],
                preferred_element_type=jnp.float32) + b2_ref[...]
    o_ref[...] = _gelu(o).astype(o_ref.dtype)


def filter_encoder(bases_pad, w1, b1, w2, b2):
    Ep, Bp = bases_pad.shape
    HEp = w1.shape[1]
    const = pl.Buffered(1)
    return pl.pallas_call(
        _filter_kernel,
        out_shape=jax.ShapeDtypeStruct((Ep, HEp), jnp.bfloat16),  # re-streamed per layer
        grid=(Ep // TROW,),
        in_specs=[
            pl.BlockSpec((TROW, Bp), lambda i: (i, 0)),
            pl.BlockSpec((Bp, HEp), lambda i: (0, 0), pipeline_mode=const),
            pl.BlockSpec((1, HEp), lambda i: (0, 0), pipeline_mode=const),
            pl.BlockSpec((HEp, HEp), lambda i: (0, 0), pipeline_mode=const),
            pl.BlockSpec((1, HEp), lambda i: (0, 0), pipeline_mode=const),
        ],
        out_specs=pl.BlockSpec((TROW, HEp), lambda i: (i, 0)),
        compiler_params=pltpu.CompilerParams(
            dimension_semantics=("parallel",),
            vmem_limit_bytes=VMEM_LIMIT),
    )(bases_pad, w1, b1, w2, b2)


# --------------- per-layer edge kernel: encode, gather, scatter ---------------

def _make_edge_kernel(n_real_edges, tile_rows, n_pad_nodes):
    def kernel(src_ref, dst_ref, x_ref, ea_ref, bas_ref,
               we_ref, be_ref, wp1_ref, bp1_ref, aggr_ref):
        i = pl.program_id(0)

        @pl.when(i == 0)
        def _():
            aggr_ref[...] = jnp.zeros_like(aggr_ref)

        one = jnp.ones((), jnp.bfloat16)
        zero = jnp.zeros((), jnp.bfloat16)
        node_iota = lax.broadcasted_iota(jnp.int32, (tile_rows, n_pad_nodes), 1)

        # one-hot MXU gather: x[src]   (replaces the serial row-copy loop)
        gather_oh = jnp.where(node_iota == src_ref[...], one, zero)
        x_src = jnp.dot(gather_oh, x_ref[...],
                        preferred_element_type=jnp.float32)

        # e = edge_encoder(edge_attr); pos_e = x[src] + e
        e_feat = jnp.dot(ea_ref[...], we_ref[...],
                         preferred_element_type=jnp.float32) + be_ref[...]
        pos_e = x_src + e_feat

        # v = ReLU(pre_ffn(pos_e)) * bases, masked to real edges
        v = jnp.dot(pos_e.astype(jnp.bfloat16), wp1_ref[...],
                    preferred_element_type=jnp.float32) + bp1_ref[...]
        v = jnp.maximum(v, 0.0) * bas_ref[...].astype(jnp.float32)
        rows = lax.broadcasted_iota(jnp.int32, (tile_rows, 1), 0) + i * tile_rows
        v = jnp.where(rows < n_real_edges, v, 0.0)

        # one-hot MXU scatter-sum to destination nodes (copy_e / sum)
        scatter_oh = jnp.where(node_iota == dst_ref[...], one, zero)
        aggr_ref[...] += lax.dot_general(
            scatter_oh, v.astype(jnp.bfloat16),
            (((0,), (0,)), ((), ())),
            preferred_element_type=jnp.float32)
    return kernel


def edge_conv(src2d, dst2d, x_bf, edge_attr_p, bases_enc, we, be, wp1, bp1,
              n_edges):
    Np, Hp = x_bf.shape
    Ep, Fp = edge_attr_p.shape
    HEp = bases_enc.shape[1]
    const = pl.Buffered(1)
    kernel = _make_edge_kernel(n_edges, TROW, Np)
    return pl.pallas_call(
        kernel,
        out_shape=jax.ShapeDtypeStruct((Np, HEp), jnp.float32),
        grid=(Ep // TROW,),
        in_specs=[
            pl.BlockSpec((TROW, 1), lambda i: (i, 0)),               # src idx tile
            pl.BlockSpec((TROW, 1), lambda i: (i, 0)),               # dst idx tile
            pl.BlockSpec((Np, Hp), lambda i: (0, 0),                 # x resident (bf16)
                         pipeline_mode=const),
            pl.BlockSpec((TROW, Fp), lambda i: (i, 0)),              # edge_attr (bf16)
            pl.BlockSpec((TROW, HEp), lambda i: (i, 0)),             # bases_enc (bf16)
            pl.BlockSpec((Fp, Hp), lambda i: (0, 0), pipeline_mode=const),   # We
            pl.BlockSpec((1, Hp), lambda i: (0, 0), pipeline_mode=const),    # be
            pl.BlockSpec((Hp, HEp), lambda i: (0, 0), pipeline_mode=const),  # Wp1
            pl.BlockSpec((1, HEp), lambda i: (0, 0), pipeline_mode=const),   # bp1
        ],
        out_specs=pl.BlockSpec((Np, HEp), lambda i: (0, 0)),         # resident aggr
        compiler_params=pltpu.CompilerParams(
            dimension_semantics=("arbitrary",),
            vmem_limit_bytes=VMEM_LIMIT),
    )(src2d, dst2d, x_bf, edge_attr_p, bases_enc, we, be, wp1, bp1)


# ------- per-layer node kernel: y, xtx partial, ffn, BN affine, sum-pool ------

def _make_node_kernel(n_real_nodes, tile_rows):
    def kernel(x_ref, aggr_ref, wp2_ref, bp2_ref, wf1_ref, bf1_ref,
               wf2_ref, bf2_ref, bns_ref, bnt_ref,
               xo_ref, xtx_ref, pool_ref):
        i = pl.program_id(0)

        pre2 = jnp.dot(x_ref[...].astype(jnp.bfloat16), wp2_ref[...],
                       preferred_element_type=jnp.float32) + bp2_ref[...]
        y = aggr_ref[...] + jnp.maximum(pre2, 0.0)

        rows = lax.broadcasted_iota(jnp.int32, (tile_rows, 1), 0) + i * tile_rows
        mask = (rows < n_real_nodes).astype(jnp.float32)
        y_m = (y * mask).astype(jnp.bfloat16)

        # TODO(synk): compute_covariance undefined in reference; using Gram
        # matrix y^T y, emitted as a per-tile partial (summed outside) so the
        # node grid axis stays "parallel" (megacore-friendly on v7x).
        xtx_ref[0] = lax.dot_general(y_m, y_m, (((0,), (0,)), ((), ())),
                                     preferred_element_type=jnp.float32)

        h = jnp.dot(y.astype(jnp.bfloat16), wf1_ref[...],
                    preferred_element_type=jnp.float32) + bf1_ref[...]
        h = jnp.maximum(h, 0.0)
        o = jnp.dot(h.astype(jnp.bfloat16), wf2_ref[...],
                    preferred_element_type=jnp.float32) + bf2_ref[...]
        # ffn order is Linear->ReLU->Linear->ReLU->BatchNorm (eval-mode affine)
        o = (jnp.maximum(o, 0.0) * bns_ref[...] + bnt_ref[...]) * mask
        xo_ref[...] = o
        # fused SumPooling partial for this layer (summed across tiles outside)
        pool_ref[...] = jnp.sum(o, axis=0, keepdims=True)
    return kernel


def node_update(x_pad, aggr, layer, n_nodes):
    Np, Hp = x_pad.shape
    HEp = aggr.shape[1]
    nt = Np // TROW
    wp2, bp2 = layer["pre_ffn2"]
    wf1, bf1 = layer["ffn1"]
    wf2, bf2 = layer["ffn2"]
    bns, bnt = layer["bn"]
    const = pl.Buffered(1)
    kernel = _make_node_kernel(n_nodes, TROW)
    x_new, xtx_parts, pool_parts = pl.pallas_call(
        kernel,
        out_shape=(jax.ShapeDtypeStruct((Np, Hp), jnp.float32),
                   jax.ShapeDtypeStruct((nt, HEp, HEp), jnp.float32),
                   jax.ShapeDtypeStruct((nt, Hp), jnp.float32)),
        grid=(nt,),
        in_specs=[
            pl.BlockSpec((TROW, Hp), lambda i: (i, 0)),
            pl.BlockSpec((TROW, HEp), lambda i: (i, 0)),
            pl.BlockSpec((Hp, HEp), lambda i: (0, 0), pipeline_mode=const),
            pl.BlockSpec((1, HEp), lambda i: (0, 0), pipeline_mode=const),
            pl.BlockSpec((HEp, HEp), lambda i: (0, 0), pipeline_mode=const),
            pl.BlockSpec((1, HEp), lambda i: (0, 0), pipeline_mode=const),
            pl.BlockSpec((HEp, Hp), lambda i: (0, 0), pipeline_mode=const),
            pl.BlockSpec((1, Hp), lambda i: (0, 0), pipeline_mode=const),
            pl.BlockSpec((1, Hp), lambda i: (0, 0), pipeline_mode=const),
            pl.BlockSpec((1, Hp), lambda i: (0, 0), pipeline_mode=const),
        ],
        out_specs=(pl.BlockSpec((TROW, Hp), lambda i: (i, 0)),
                   pl.BlockSpec((1, HEp, HEp), lambda i: (i, 0, 0)),
                   pl.BlockSpec((1, Hp), lambda i: (i, 0))),
        compiler_params=pltpu.CompilerParams(
            dimension_semantics=("parallel",),
            vmem_limit_bytes=VMEM_LIMIT),
    )(x_pad, aggr, wp2, bp2, wf1, bf1, wf2, bf2, bns, bnt)
    # tiny glue reductions over tile partials (nt is small)
    return x_new, jnp.sum(xtx_parts, axis=0), jnp.sum(pool_parts, axis=0)


# ---------------- parameter construction (deterministic, synthetic) -----------

def _linear_params(key, fan_in, fan_out):
    k1, k2 = jax.random.split(key)
    bound = 1.0 / jnp.sqrt(jnp.float32(fan_in))
    w = jax.random.uniform(k1, (fan_in, fan_out), jnp.float32, -bound, bound)
    b = jax.random.uniform(k2, (fan_out,), jnp.float32, -bound, bound)
    return w, b


def _pad_linear(w, b, rows, cols):
    wp = _pad2(w, rows, cols).astype(jnp.bfloat16)     # bf16 MXU operand
    bp = _pad2(b.reshape(1, -1), 1, cols)              # f32 epilogue
    return wp, bp


def init_params(key, hidden, exp_n, layers, num_basis, num_class):
    he = hidden * exp_n
    Hp = _pad_to(hidden, LANE)
    HEp = _pad_to(he, LANE)
    Bp = _pad_to(num_basis, LANE)
    Fp = _pad_to(7, LANE)
    Cp = _pad_to(num_class, LANE)
    keys = jax.random.split(key, 4 + layers)
    params = dict(hidden=hidden, hidden_exp=he, layers=layers,
                  num_class=num_class, Hp=Hp, HEp=HEp, Bp=Bp, Fp=Fp, Cp=Cp)

    emb = jax.random.normal(keys[0], (1, hidden), jnp.float32)
    params["node_emb"] = _pad2(emb, 1, Hp)

    params["filt1"] = _pad_linear(*_linear_params(keys[1], num_basis, he), Bp, HEp)
    params["filt2"] = _pad_linear(*_linear_params(keys[2], he, he), HEp, HEp)

    # graph_pred_linear: place the H real rows of each layer block at l*Hp
    # (kept f32 -- the final prediction matmul stays in f32 for precision)
    wg, bg = _linear_params(keys[3], hidden * layers, num_class)
    wg_p = jnp.zeros((layers * Hp, Cp), jnp.float32)
    for l in range(layers):
        wg_p = wg_p.at[l * Hp:l * Hp + hidden, :num_class].set(
            wg[l * hidden:(l + 1) * hidden])
    params["pred"] = (wg_p, _pad2(bg.reshape(1, -1), 1, Cp))

    convs = []
    for li in range(layers):
        lk = jax.random.split(keys[4 + li], 5)
        # BatchNorm1d(hidden) at torch init: gamma=1, beta=0, running stats (0,1)
        gamma = jnp.ones((hidden,), jnp.float32)
        beta = jnp.zeros((hidden,), jnp.float32)
        rmean = jnp.zeros((hidden,), jnp.float32)
        rvar = jnp.ones((hidden,), jnp.float32)
        bn_scale = gamma / jnp.sqrt(rvar + 1e-5)
        bn_shift = beta - rmean * bn_scale
        layer = dict(
            edge_enc=_pad_linear(*_linear_params(lk[0], 7, hidden), Fp, Hp),
            pre_ffn=_pad_linear(*_linear_params(lk[1], hidden, he), Hp, HEp),
            pre_ffn2=_pad_linear(*_linear_params(lk[2], hidden, he), Hp, HEp),
            ffn1=_pad_linear(*_linear_params(lk[3], he, he), HEp, HEp),
            ffn2=_pad_linear(*_linear_params(lk[4], he, hidden), HEp, Hp),
            bn=(_pad2(bn_scale.reshape(1, -1), 1, Hp),
                _pad2(bn_shift.reshape(1, -1), 1, Hp)),
        )
        convs.append(layer)
    params["convs"] = convs
    return params


# ---------------- forward pass -------------------------------------------------

def net_forward(params, src, dst, node_idx, edge_attr, bases, num_nodes):
    H, HE, L = params["hidden"], params["hidden_exp"], params["layers"]
    num_edges = src.shape[0]
    Np = _pad_to(num_nodes, TROW)
    Ep = _pad_to(num_edges, TROW)

    # node_encoder: Embedding(1, H) lookup (glue gather; all indices are 0)
    x = params["node_emb"][node_idx].astype(jnp.float32)        # [N, Hp]
    x = _pad_rows(x, Np)                                        # padded rows = 0

    edge_attr_p = _pad2(edge_attr.astype(jnp.float32), Ep,
                        params["Fp"]).astype(jnp.bfloat16)
    bases_p = _pad2(bases.astype(jnp.float32), Ep,
                    params["Bp"]).astype(jnp.bfloat16)
    src_p = jnp.pad(src.astype(jnp.int32), (0, Ep - num_edges)).reshape(Ep, 1)
    dst_p = jnp.pad(dst.astype(jnp.int32), (0, Ep - num_edges)).reshape(Ep, 1)

    # filter_encoder: Linear -> GELU -> Linear -> GELU on bases
    w1, b1 = params["filt1"]
    w2, b2 = params["filt2"]
    bases_enc = filter_encoder(bases_p, w1, b1, w2, b2)         # [Ep, HEp] bf16

    pooled = []
    xtx_sum = None
    for layer in params["convs"]:
        we, be = layer["edge_enc"]
        wp1, bp1 = layer["pre_ffn"]
        x_bf = x.astype(jnp.bfloat16)                           # bf16 residency
        aggr = edge_conv(src_p, dst_p, x_bf, edge_attr_p, bases_enc,
                         we, be, wp1, bp1, num_edges)           # [Np, HEp]
        x, xtx, pool_l = node_update(x, aggr, layer, num_nodes) # [Np,Hp],[HEp,HEp],[Hp]
        pooled.append(pool_l)                                   # fused SumPooling
        xtx_sum = xtx if xtx_sum is None else xtx_sum + xtx     # cov_jk: 'S'

    # emb_jk 'C' + SumPooling == concat of per-layer pooled sums (no Np-wide
    # concat / re-read). F.dropout in eval mode: identity
    # (TODO(synk): training-mode dropout / batch-stat BN not applied).
    pooled_cat = jnp.concatenate(pooled, axis=-1)[None, :]      # [1, L*Hp] f32
    wg, bg = params["pred"]
    pred = pooled_cat @ wg + bg                                 # tiny f32 glue matmul

    return pred[:, :params["num_class"]], xtx_sum[:HE, :HE]


if __name__ == "__main__":
    key = jax.random.PRNGKey(0)
    hidden, exp_n, layers = 32, 2, 2
    num_basis, num_class = 8, 4
    num_nodes, num_edges = 16, 32

    kp, kg1, kg2, ke, kb = jax.random.split(key, 5)
    params = init_params(kp, hidden, exp_n, layers, num_basis, num_class)

    # synthetic graph + features
    src = jax.random.randint(kg1, (num_edges,), 0, num_nodes, dtype=jnp.int32)
    dst = jax.random.randint(kg2, (num_edges,), 0, num_nodes, dtype=jnp.int32)
    node_idx = jnp.zeros((num_nodes,), jnp.int32)               # Embedding(1, H) indices
    edge_attr = jax.random.normal(ke, (num_edges, 7), jnp.float32)
    bases = jax.random.normal(kb, (num_edges, num_basis), jnp.float32)

    pred, cov = net_forward(params, src, dst, node_idx, edge_attr, bases,
                            num_nodes)
    jax.block_until_ready(pred)
    jax.block_until_ready(cov)
    assert pred.shape == (1, num_class)
    assert cov.shape == (hidden * exp_n, hidden * exp_n)
    print("KERNEL_OK")
</pallas_src>

<mosaic_0001>
module attributes {stable_mosaic.version = 11 : i64} {
  func.func @_filter_kernel(%arg0: i32, %arg1: memref<512x128xbf16, #tpu.memory_space<vmem>>, %arg2: memref<128x128xbf16, #tpu.memory_space<vmem>>, %arg3: memref<1x128xf32, #tpu.memory_space<vmem>>, %arg4: memref<128x128xbf16, #tpu.memory_space<vmem>>, %arg5: memref<1x128xf32, #tpu.memory_space<vmem>>, %arg6: memref<512x128xbf16, #tpu.memory_space<vmem>>) attributes {dimension_semantics = [#tpu.dimension_semantics<parallel>], iteration_bounds = array<i64: 1>, scalar_prefetch = 0 : i64, scratch_operands = 0 : i64, tpu.core_type = #tpu.core_type<tc>, window_params = [{transform_indices = @transform_0, window_bounds = array<i64: 512, 128>}, {pipeline_mode = #tpu.pipeline_mode<synchronous>, transform_indices = @transform_1, window_bounds = array<i64: 128, 128>}, {pipeline_mode = #tpu.pipeline_mode<synchronous>, transform_indices = @transform_2, window_bounds = array<i64: 1, 128>}, {pipeline_mode = #tpu.pipeline_mode<synchronous>, transform_indices = @transform_3, window_bounds = array<i64: 128, 128>}, {pipeline_mode = #tpu.pipeline_mode<synchronous>, transform_indices = @transform_4, window_bounds = array<i64: 1, 128>}, {transform_indices = @transform_5, window_bounds = array<i64: 512, 128>}]} {
    %c0 = arith.constant 0 : index
    %c0_0 = arith.constant 0 : index
    %0 = vector.load %arg1[%c0, %c0_0] : memref<512x128xbf16, #tpu.memory_space<vmem>>, vector<512x128xbf16>
    %c0_1 = arith.constant 0 : index
    %c0_2 = arith.constant 0 : index
    %1 = vector.load %arg2[%c0_1, %c0_2] : memref<128x128xbf16, #tpu.memory_space<vmem>>, vector<128x128xbf16>
    %cst = arith.constant dense<0.000000e+00> : vector<512x128xf32>
    %2 = tpu.matmul %0, %1, %cst {dimension_numbers = #tpu.dot_dimension_numbers<[1], [0], [0], [1], [0, 0, 1, 1], [], []>} : vector<512x128xbf16>, vector<128x128xbf16>, vector<512x128xf32> -> vector<512x128xf32>
    %c0_3 = arith.constant 0 : index
    %c0_4 = arith.constant 0 : index
    %3 = vector.load %arg3[%c0_3, %c0_4] : memref<1x128xf32, #tpu.memory_space<vmem>>, vector<1x128xf32>
    %4 = vector.broadcast %3 : vector<1x128xf32> to vector<512x128xf32>
    %5 = arith.addf %2, %4 : vector<512x128xf32>
    %cst_5 = arith.constant 5.000000e-01 : f32
    %6 = vector.broadcast %cst_5 : f32 to vector<512x128xf32>
    %7 = arith.mulf %6, %5 : vector<512x128xf32>
    %cst_6 = arith.constant 4.471500e-02 : f32
    %8 = vector.broadcast %cst_6 : f32 to vector<512x128xf32>
    %9 = arith.mulf %8, %5 : vector<512x128xf32>
    %10 = arith.mulf %9, %5 : vector<512x128xf32>
    %11 = arith.mulf %10, %5 : vector<512x128xf32>
    %12 = arith.addf %5, %11 : vector<512x128xf32>
    %cst_7 = arith.constant 0.797884583 : f32
    %13 = vector.broadcast %cst_7 : f32 to vector<512x128xf32>
    %14 = arith.mulf %13, %12 : vector<512x128xf32>
    %15 = math.tanh %14 : vector<512x128xf32>
    %cst_8 = arith.constant 1.000000e+00 : f32
    %16 = vector.broadcast %cst_8 : f32 to vector<512x128xf32>
    %17 = arith.addf %16, %15 : vector<512x128xf32>
    %18 = arith.mulf %7, %17 : vector<512x128xf32>
    %19 = arith.truncf %18 : vector<512x128xf32> to vector<512x128xbf16>
    %c0_9 = arith.constant 0 : index
    %c0_10 = arith.constant 0 : index
    %20 = vector.load %arg4[%c0_9, %c0_10] : memref<128x128xbf16, #tpu.memory_space<vmem>>, vector<128x128xbf16>
    %cst_11 = arith.constant dense<0.000000e+00> : vector<512x128xf32>
    %21 = tpu.matmul %19, %20, %cst_11 {dimension_numbers = #tpu.dot_dimension_numbers<[1], [0], [0], [1], [0, 0, 1, 1], [], []>} : vector<512x128xbf16>, vector<128x128xbf16>, vector<512x128xf32> -> vector<512x128xf32>
    %c0_12 = arith.constant 0 : index
    %c0_13 = arith.constant 0 : index
    %22 = vector.load %arg5[%c0_12, %c0_13] : memref<1x128xf32, #tpu.memory_space<vmem>>, vector<1x128xf32>
    %23 = vector.broadcast %22 : vector<1x128xf32> to vector<512x128xf32>
    %24 = arith.addf %21, %23 : vector<512x128xf32>
    %cst_14 = arith.constant 5.000000e-01 : f32
    %25 = vector.broadcast %cst_14 : f32 to vector<512x128xf32>
    %26 = arith.mulf %25, %24 : vector<512x128xf32>
    %cst_15 = arith.constant 4.471500e-02 : f32
    %27 = vector.broadcast %cst_15 : f32 to vector<512x128xf32>
    %28 = arith.mulf %27, %24 : vector<512x128xf32>
    %29 = arith.mulf %28, %24 : vector<512x128xf32>
    %30 = arith.mulf %29, %24 : vector<512x128xf32>
    %31 = arith.addf %24, %30 : vector<512x128xf32>
    %cst_16 = arith.constant 0.797884583 : f32
    %32 = vector.broadcast %cst_16 : f32 to vector<512x128xf32>
    %33 = arith.mulf %32, %31 : vector<512x128xf32>
    %34 = math.tanh %33 : vector<512x128xf32>
    %cst_17 = arith.constant 1.000000e+00 : f32
    %35 = vector.broadcast %cst_17 : f32 to vector<512x128xf32>
    %36 = arith.addf %35, %34 : vector<512x128xf32>
    %37 = arith.mulf %26, %36 : vector<512x128xf32>
    %38 = arith.truncf %37 : vector<512x128xf32> to vector<512x128xbf16>
    %c0_18 = arith.constant 0 : index
    %c0_19 = arith.constant 0 : index
    %39 = vector.load %arg6[%c0_18, %c0_19] : memref<512x128xbf16, #tpu.memory_space<vmem>>, vector<512x128xbf16>
    tpu.vector_store %arg6[%c0_18, %c0_19], %38 {strides = array<i32>} : memref<512x128xbf16, #tpu.memory_space<vmem>>, vector<512x128xbf16>,
    return
  }
  func.func @transform_0(%arg0: i32) -> (i32, i32) {
    %c0_i32 = arith.constant 0 : i32
    %c0_i32_0 = arith.constant 0 : i32
    return %arg0, %c0_i32 : i32, i32
  }
  func.func @transform_1(%arg0: i32) -> (i32, i32) {
    %c0_i32 = arith.constant 0 : i32
    %c0_i32_0 = arith.constant 0 : i32
    %c0_i32_1 = arith.constant 0 : i32
    return %c0_i32, %c0_i32_0 : i32, i32
  }
  func.func @transform_2(%arg0: i32) -> (i32, i32) {
    %c0_i32 = arith.constant 0 : i32
    %c0_i32_0 = arith.constant 0 : i32
    %c0_i32_1 = arith.constant 0 : i32
    return %c0_i32, %c0_i32_0 : i32, i32
  }
  func.func @transform_3(%arg0: i32) -> (i32, i32) {
    %c0_i32 = arith.constant 0 : i32
    %c0_i32_0 = arith.constant 0 : i32
    %c0_i32_1 = arith.constant 0 : i32
    return %c0_i32, %c0_i32_0 : i32, i32
  }
  func.func @transform_4(%arg0: i32) -> (i32, i32) {
    %c0_i32 = arith.constant 0 : i32
    %c0_i32_0 = arith.constant 0 : i32
    %c0_i32_1 = arith.constant 0 : i32
    return %c0_i32, %c0_i32_0 : i32, i32
  }
  func.func @transform_5(%arg0: i32) -> (i32, i32) {
    %c0_i32 = arith.constant 0 : i32
    %c0_i32_0 = arith.constant 0 : i32
    return %arg0, %c0_i32 : i32, i32
  }
}

</mosaic_0001>

<llo_original>
// kernel: tpu_custom_call.1
$region0: #{tpu_custom_call.1}
  #allocation0 [shape = 'u32[]', space=smem, size = 0x4, offset = 0x4, fixed_abs, tag = 'smem constant byte address 0x4 - core index']
  #allocation1 [shape = 'u32[144,128]{1,0:T(1,128)}', space=vmem, size = 0x12000, scoped, tag = 'internal scratch']
  %s0 = inlined_call_operand.hbm [shape: bf16[512,128], index: 0, kind: input, shape index: {}]
  %s1 = inlined_call_operand.hbm [shape: bf16[128,128], index: 1, kind: input, shape index: {}]
  %s2 = inlined_call_operand.hbm [shape: f32[1,128], index: 2, kind: input, shape index: {}]
  %s3 = inlined_call_operand.hbm [shape: bf16[128,128], index: 3, kind: input, shape index: {}]
  %s4 = inlined_call_operand.hbm [shape: f32[1,128], index: 4, kind: input, shape index: {}]
  %s5 = inlined_call_operand.hbm [shape: bf16[512,128], index: 5, kind: output, shape index: {}]
  %s6 = sld [smem:[#allocation0]]
  $region50: #{tpu_custom_call.1} parent=0
    _
  %s8 = ssub.s32 1, %s6
  %s9 = scalar_select 0, %s8, %s6
  $region1: #{tpu_custom_call.1} parent=0
    #allocation2 [shape = 'u8[131072]{0}', space=vmem, size = 0x20000, scoped, tag = 'input window, operand 0, single buffered']
    #allocation3 [shape = 's32[1]{0}', space=sflag, size = 0x4, scoped, tag = 'scoped memory for tpu_custom_call.1']
    #allocation4 [shape = 's32[1]{0}', space=sflag, size = 0x4, scoped, tag = 'scoped memory for tpu_custom_call.1']
    #allocation5 [shape = 'u8[32768]{0}', space=vmem, size = 0x8000, scoped, tag = 'input window, operand 1, single buffered']
    #allocation6 [shape = 's32[1]{0}', space=sflag, size = 0x4, scoped, tag = 'scoped memory for tpu_custom_call.1']
    #allocation7 [shape = 'u8[512]{0}', space=vmem, size = 0x400, scoped, tag = 'input window, operand 2, single buffered']
    #allocation8 [shape = 'u8[32768]{0}', space=vmem, size = 0x8000, scoped, tag = 'input window, operand 3, single buffered']
    #allocation9 [shape = 's32[1]{0}', space=sflag, size = 0x4, scoped, tag = 'scoped memory for tpu_custom_call.1']
    #allocation10 [shape = 'u8[512]{0}', space=vmem, size = 0x400, scoped, tag = 'input window, operand 4, single buffered']
    #allocation11 [shape = 'u8[131072]{0}', space=vmem, size = 0x20000, scoped, tag = 'output window, operand 0, single buffered']
    %10 = vsyncpa [#allocation3], 0
    %11 = vsyncpa [#allocation6], 0
    %12 = vsyncpa [#allocation9], 0
    %13 = vsyncpa [#allocation4], 0
    // Predicated region
    $region2: #{tpu_custom_call.1} parent=1 // pred_check
      _
    $region3: #{tpu_custom_call.1} parent=1 // pred_check_branch
      %15 = sbr.rel (0) target = $region5
    $region4: #{tpu_custom_call.1} parent=1 // pred_region
      %s17 = ssub.s32 4096, 4096
      %18 = vsyncadd [#allocation3], %s17
      %s19 = sshll.u32 [#allocation2], 4
      %s20 = int_to_ptr.vmem [resolvable:$true] %s19
      %25 = dma.hbm_to_vmem [thread:$0]  %s0, 4096, %s20, [#allocation3], 64, 64, 4
    $region5: #{tpu_custom_call.1} parent=1 // pred_fallthru
      _
    // Predicated region
    $region6: #{tpu_custom_call.1} parent=1 // pred_check
      _
    $region7: #{tpu_custom_call.1} parent=1 // pred_check_branch
      %27 = sbr.rel (0) target = $region9
    $region8: #{tpu_custom_call.1} parent=1 // pred_region
      %s29 = ssub.s32 1024, 1024
      %30 = vsyncadd [#allocation6], %s29
      %s31 = sshll.u32 [#allocation5], 4
      %s32 = int_to_ptr.vmem [resolvable:$true] %s31
      %37 = dma.hbm_to_vmem [thread:$0]  %s1, 1024, %s32, [#allocation6], 64, 64, 4
    $region9: #{tpu_custom_call.1} parent=1 // pred_fallthru
      _
    // Predicated region
    $region10: #{tpu_custom_call.1} parent=1 // pred_check
      _
    $region11: #{tpu_custom_call.1} parent=1 // pred_check_branch
      %39 = sbr.rel (0) target = $region13
    $region12: #{tpu_custom_call.1} parent=1 // pred_region
      %s41 = ssub.s32 16, 16
      %42 = vsyncadd [#allocation6], %s41
      %s44 = sshll.u32 [#allocation7], 4
      %s45 = int_to_ptr.vmem [resolvable:$true] %s44
      %47 = dma.hbm_to_vmem [thread:$0]  %s2, 16, %s45, [#allocation6]
    $region13: #{tpu_custom_call.1} parent=1 // pred_fallthru
      _
    // Predicated region
    $region14: #{tpu_custom_call.1} parent=1 // pred_check
      _
    $region15: #{tpu_custom_call.1} parent=1 // pred_check_branch
      %49 = sbr.rel (0) target = $region17
    $region16: #{tpu_custom_call.1} parent=1 // pred_region
      %s51 = ssub.s32 1024, 1024
      %52 = vsyncadd [#allocation9], %s51
      %s53 = sshll.u32 [#allocation8], 4
      %s54 = int_to_ptr.vmem [resolvable:$true] %s53
      %59 = dma.hbm_to_vmem [thread:$0]  %s3, 1024, %s54, [#allocation9], 64, 64, 4
    $region17: #{tpu_custom_call.1} parent=1 // pred_fallthru
      _
    // Predicated region
    $region18: #{tpu_custom_call.1} parent=1 // pred_check
      _
    $region19: #{tpu_custom_call.1} parent=1 // pred_check_branch
      %61 = sbr.rel (0) target = $region21
    $region20: #{tpu_custom_call.1} parent=1 // pred_region
      %s63 = ssub.s32 16, 16
      %64 = vsyncadd [#allocation9], %s63
      %s66 = sshll.u32 [#allocation10], 4
      %s67 = int_to_ptr.vmem [resolvable:$true] %s66
      %69 = dma.hbm_to_vmem [thread:$0]  %s4, 16, %s67, [#allocation9]
    $region21: #{tpu_custom_call.1} parent=1 // pred_fallthru
      _
    // Predicated region
    $region22: #{tpu_custom_call.1} parent=1 // pred_check
      _
    $region23: #{tpu_custom_call.1} parent=1 // pred_check_branch
      %71 = sbr.rel (0) target = $region25
    $region24: #{tpu_custom_call.1} parent=1 // pred_region
      %72 = dma.done [#allocation3], 4096
    $region25: #{tpu_custom_call.1} parent=1 // pred_fallthru
      _
    // Predicated region
    $region26: #{tpu_custom_call.1} parent=1 // pred_check
      _
    $region27: #{tpu_custom_call.1} parent=1 // pred_check_branch
      %74 = sbr.rel (0) target = $region29
    $region28: #{tpu_custom_call.1} parent=1 // pred_region
      %75 = dma.done [#allocation6], 1024
    $region29: #{tpu_custom_call.1} parent=1 // pred_fallthru
      _
    // Predicated region
    $region30: #{tpu_custom_call.1} parent=1 // pred_check
      _
    $region31: #{tpu_custom_call.1} parent=1 // pred_check_branch
      %77 = sbr.rel (0) target = $region33
    $region32: #{tpu_custom_call.1} parent=1 // pred_region
      %78 = dma.done [#allocation6], 16
    $region33: #{tpu_custom_call.1} parent=1 // pred_fallthru
      _
    // Predicated region
    $region34: #{tpu_custom_call.1} parent=1 // pred_check
      _
    $region35: #{tpu_custom_call.1} parent=1 // pred_check_branch
      %80 = sbr.rel (0) target = $region37
    $region36: #{tpu_custom_call.1} parent=1 // pred_region
      %81 = dma.done [#allocation9], 1024
    $region37: #{tpu_custom_call.1} parent=1 // pred_fallthru
      _
    // Predicated region
    $region38: #{tpu_custom_call.1} parent=1 // pred_check
      _
    $region39: #{tpu_custom_call.1} parent=1 // pred_check_branch
      %83 = sbr.rel (0) target = $region41
    $region40: #{tpu_custom_call.1} parent=1 // pred_region
      %84 = dma.done [#allocation9], 16
    $region41: #{tpu_custom_call.1} parent=1 // pred_fallthru
      _
    %v86 = vld [vmem:[#allocation2] sm:$0xf]
    %v87 = vld [vmem:[#allocation2 + $0x4] sm:$0xf]
    %v88 = vld [vmem:[#allocation2 + $0x8] sm:$0xf]
    %v89 = vld [vmem:[#allocation2 + $0xc] sm:$0xf]
    %v90 = vld [vmem:[#allocation2 + $0x10] sm:$0xf]
    %v91 = vld [vmem:[#allocation2 + $0x14] sm:$0xf]
    %v92 = vld [vmem:[#allocation2 + $0x18] sm:$0xf]
    %v93 = vld [vmem:[#allocation2 + $0x1c] sm:$0xf]
    %v94 = vld [vmem:[#allocation2 + $0x20] sm:$0xf]
    %v95 = vld [vmem:[#allocation2 + $0x24] sm:$0xf]
    %v96 = vld [vmem:[#allocation2 + $0x28] sm:$0xf]
    %v97 = vld [vmem:[#allocation2 + $0x2c] sm:$0xf]
    %v98 = vld [vmem:[#allocation2 + $0x30] sm:$0xf]
    %v99 = vld [vmem:[#allocation2 + $0x34] sm:$0xf]
    %v100 = vld [vmem:[#allocation2 + $0x38] sm:$0xf]
    %v101 = vld [vmem:[#allocation2 + $0x3c] sm:$0xf]
    %v102 = vld [vmem:[#allocation2 + $0x40] sm:$0xf]
    %v103 = vld [vmem:[#allocation2 + $0x44] sm:$0xf]
    %v104 = vld [vmem:[#allocation2 + $0x48] sm:$0xf]
    %v105 = vld [vmem:[#allocation2 + $0x4c] sm:$0xf]
    %v106 = vld [vmem:[#allocation2 + $0x50] sm:$0xf]
    %v107 = vld [vmem:[#allocation2 + $0x54] sm:$0xf]
    %v108 = vld [vmem:[#allocation2 + $0x58] sm:$0xf]
    %v109 = vld [vmem:[#allocation2 + $0x5c] sm:$0xf]
    %v110 = vld [vmem:[#allocation2 + $0x60] sm:$0xf]
    %v111 = vld [vmem:[#allocation2 + $0x64] sm:$0xf]
    %v112 = vld [vmem:[#allocation2 + $0x68] sm:$0xf]
    %v113 = vld [vmem:[#allocation2 + $0x6c] sm:$0xf]
    %v114 = vld [vmem:[#allocation2 + $0x70] sm:$0xf]
    %v115 = vld [vmem:[#allocation2 + $0x74] sm:$0xf]
    %v116 = vld [vmem:[#allocation2 + $0x78] sm:$0xf]
    %v117 = vld [vmem:[#allocation2 + $0x7c] sm:$0xf]
    %v118 = vld [vmem:[#allocation2 + $0x80] sm:$0xf]
    %v119 = vld [vmem:[#allocation2 + $0x84] sm:$0xf]
    %v120 = vld [vmem:[#allocation2 + $0x88] sm:$0xf]
    %v121 = vld [vmem:[#allocation2 + $0x8c] sm:$0xf]
    %v122 = vld [vmem:[#allocation2 + $0x90] sm:$0xf]
    %v123 = vld [vmem:[#allocation2 + $0x94] sm:$0xf]
    %v124 = vld [vmem:[#allocation2 + $0x98] sm:$0xf]
    %v125 = vld [vmem:[#allocation2 + $0x9c] sm:$0xf]
    %v126 = vld [vmem:[#allocation2 + $0xa0] sm:$0xf]
    %v127 = vld [vmem:[#allocation2 + $0xa4] sm:$0xf]
    %v128 = vld [vmem:[#allocation2 + $0xa8] sm:$0xf]
    %v129 = vld [vmem:[#allocation2 + $0xac] sm:$0xf]
    %v130 = vld [vmem:[#allocation2 + $0xb0] sm:$0xf]
    %v131 = vld [vmem:[#allocation2 + $0xb4] sm:$0xf]
    %v132 = vld [vmem:[#allocation2 + $0xb8] sm:$0xf]
    %v133 = vld [vmem:[#allocation2 + $0xbc] sm:$0xf]
    %v134 = vld [vmem:[#allocation2 + $0xc0] sm:$0xf]
    %v135 = vld [vmem:[#allocation2 + $0xc4] sm:$0xf]
    %v136 = vld [vmem:[#allocation2 + $0xc8] sm:$0xf]
    %v137 = vld [vmem:[#allocation2 + $0xcc] sm:$0xf]
    %v138 = vld [vmem:[#allocation2 + $0xd0] sm:$0xf]
    %v139 = vld [vmem:[#allocation2 + $0xd4] sm:$0xf]
    %v140 = vld [vmem:[#allocation2 + $0xd8] sm:$0xf]
    %v141 = vld [vmem:[#allocation2 + $0xdc] sm:$0xf]
    %v142 = vld [vmem:[#allocation2 + $0xe0] sm:$0xf]
    %v143 = vld [vmem:[#allocation2 + $0xe4] sm:$0xf]
    %v144 = vld [vmem:[#allocation2 + $0xe8] sm:$0xf]
    %v145 = vld [vmem:[#allocation2 + $0xec] sm:$0xf]
    %v146 = vld [vmem:[#allocation2 + $0xf0] sm:$0xf]
    %v147 = vld [vmem:[#allocation2 + $0xf4] sm:$0xf]
    %v148 = vld [vmem:[#allocation2 + $0xf8] sm:$0xf]
    %v149 = vld [vmem:[#allocation2 + $0xfc] sm:$0xf]
    %v150 = vld [vmem:[#allocation5] sm:$0xf]
    %v151 = vld [vmem:[#allocation5 + $0x4] sm:$0xf]
    %v152 = vld [vmem:[#allocation5 + $0x8] sm:$0xf]
    %v153 = vld [vmem:[#allocation5 + $0xc] sm:$0xf]
    %v154 = vld [vmem:[#allocation5 + $0x10] sm:$0xf]
    %v155 = vld [vmem:[#allocation5 + $0x14] sm:$0xf]
    %v156 = vld [vmem:[#allocation5 + $0x18] sm:$0xf]
    %v157 = vld [vmem:[#allocation5 + $0x1c] sm:$0xf]
    %v158 = vld [vmem:[#allocation5 + $0x20] sm:$0xf]
    %v159 = vld [vmem:[#allocation5 + $0x24] sm:$0xf]
    %v160 = vld [vmem:[#allocation5 + $0x28] sm:$0xf]
    %v161 = vld [vmem:[#allocation5 + $0x2c] sm:$0xf]
    %v162 = vld [vmem:[#allocation5 + $0x30] sm:$0xf]
    %v163 = vld [vmem:[#allocation5 + $0x34] sm:$0xf]
    %v164 = vld [vmem:[#allocation5 + $0x38] sm:$0xf]
    %v165 = vld [vmem:[#allocation5 + $0x3c] sm:$0xf]
    %v166 = vld [vmem:[#allocation7] sm:$0x1]
    %v168 = vlaneseq
    %v169 = vshrl.u32 %v168, 7
    %v170 = vsub.s32 0, %v169
    %v171 = vrot.slane %v166, %v170
    %v237 = vunpack.c.l.b16 %v86
    %v238 = vunpack.c.l.b16 %v87
    %v239 = vunpack.c.l.b16 %v88
    %v240 = vunpack.c.l.b16 %v89
    %v241 = vunpack.c.l.b16 %v90
    %v242 = vunpack.c.l.b16 %v91
    %v243 = vunpack.c.l.b16 %v92
    %v244 = vunpack.c.l.b16 %v93
    %v245 = vunpack.c.l.b16 %v94
    %v246 = vunpack.c.l.b16 %v95
    %v247 = vunpack.c.l.b16 %v96
    %v248 = vunpack.c.l.b16 %v97
    %v249 = vunpack.c.l.b16 %v98
    %v250 = vunpack.c.l.b16 %v99
    %v251 = vunpack.c.l.b16 %v100
    %v252 = vunpack.c.l.b16 %v101
    %v253 = vunpack.c.l.b16 %v102
    %v254 = vunpack.c.l.b16 %v103
    %v255 = vunpack.c.l.b16 %v104
    %v256 = vunpack.c.l.b16 %v105
    %v257 = vunpack.c.l.b16 %v106
    %v258 = vunpack.c.l.b16 %v107
    %v259 = vunpack.c.l.b16 %v108
    %v260 = vunpack.c.l.b16 %v109
    %v261 = vunpack.c.l.b16 %v110
    %v262 = vunpack.c.l.b16 %v111
    %v263 = vunpack.c.l.b16 %v112
    %v264 = vunpack.c.l.b16 %v113
    %v265 = vunpack.c.l.b16 %v114
    %v266 = vunpack.c.l.b16 %v115
    %v267 = vunpack.c.l.b16 %v116
    %v268 = vunpack.c.l.b16 %v117
    %v269 = vunpack.c.l.b16 %v118
    %v270 = vunpack.c.l.b16 %v119
    %v271 = vunpack.c.l.b16 %v120
    %v272 = vunpack.c.l.b16 %v121
    %v273 = vunpack.c.l.b16 %v122
    %v274 = vunpack.c.l.b16 %v123
    %v275 = vunpack.c.l.b16 %v124
    %v276 = vunpack.c.l.b16 %v125
    %v277 = vunpack.c.l.b16 %v126
    %v278 = vunpack.c.l.b16 %v127
    %v279 = vunpack.c.l.b16 %v128
    %v280 = vunpack.c.l.b16 %v129
    %v281 = vunpack.c.l.b16 %v130
    %v282 = vunpack.c.l.b16 %v131
    %v283 = vunpack.c.l.b16 %v132
    %v284 = vunpack.c.l.b16 %v133
    %v285 = vunpack.c.l.b16 %v134
    %v286 = vunpack.c.l.b16 %v135
    %v287 = vunpack.c.l.b16 %v136
    %v288 = vunpack.c.l.b16 %v137
    %v289 = vunpack.c.l.b16 %v138
    %v290 = vunpack.c.l.b16 %v139
    %v291 = vunpack.c.l.b16 %v140
    %v292 = vunpack.c.l.b16 %v141
    %v293 = vunpack.c.l.b16 %v142
    %v294 = vunpack.c.l.b16 %v143
    %v295 = vunpack.c.l.b16 %v144
    %v296 = vunpack.c.l.b16 %v145
    %v297 = vunpack.c.l.b16 %v146
    %v298 = vunpack.c.l.b16 %v147
    %v299 = vunpack.c.l.b16 %v148
    %v300 = vunpack.c.l.b16 %v149
    %v301 = vpack.c.b16 %v238, %v237
    %v302 = vpack.c.b16 %v240, %v239
    %v303 = vpack.c.b16 %v242, %v241
    %v304 = vpack.c.b16 %v244, %v243
    %v305 = vpack.c.b16 %v246, %v245
    %v306 = vpack.c.b16 %v248, %v247
    %v307 = vpack.c.b16 %v250, %v249
    %v308 = vpack.c.b16 %v252, %v251
    %v309 = vpack.c.b16 %v254, %v253
    %v310 = vpack.c.b16 %v256, %v255
    %v311 = vpack.c.b16 %v258, %v257
    %v312 = vpack.c.b16 %v260, %v259
    %v313 = vpack.c.b16 %v262, %v261
    %v314 = vpack.c.b16 %v264, %v263
    %v315 = vpack.c.b16 %v266, %v265
    %v316 = vpack.c.b16 %v268, %v267
    %v317 = vpack.c.b16 %v270, %v269
    %v318 = vpack.c.b16 %v272, %v271
    %v319 = vpack.c.b16 %v274, %v273
    %v320 = vpack.c.b16 %v276, %v275
    %v321 = vpack.c.b16 %v278, %v277
    %v322 = vpack.c.b16 %v280, %v279
    %v323 = vpack.c.b16 %v282, %v281
    %v324 = vpack.c.b16 %v284, %v283
    %v325 = vpack.c.b16 %v286, %v285
    %v326 = vpack.c.b16 %v288, %v287
    %v327 = vpack.c.b16 %v290, %v289
    %v328 = vpack.c.b16 %v292, %v291
    %v329 = vpack.c.b16 %v294, %v293
    %v330 = vpack.c.b16 %v296, %v295
    %v331 = vpack.c.b16 %v298, %v297
    %v332 = vpack.c.b16 %v300, %v299
    %v381 = vunpack.c.l.b16 %v150
    %v382 = vunpack.c.l.b16 %v151
    %v383 = vunpack.c.l.b16 %v152
    %v384 = vunpack.c.l.b16 %v153
    %v385 = vunpack.c.l.b16 %v154
    %v386 = vunpack.c.l.b16 %v155
    %v387 = vunpack.c.l.b16 %v156
    %v388 = vunpack.c.l.b16 %v157
    %v389 = vunpack.c.l.b16 %v158
    %v390 = vunpack.c.l.b16 %v159
    %v391 = vunpack.c.l.b16 %v160
    %v392 = vunpack.c.l.b16 %v161
    %v393 = vunpack.c.l.b16 %v162
    %v394 = vunpack.c.l.b16 %v163
    %v395 = vunpack.c.l.b16 %v164
    %v396 = vunpack.c.l.b16 %v165
    %v397 = vpack.c.b16 %v382, %v381
    %v398 = vpack.c.b16 %v384, %v383
    %v399 = vpack.c.b16 %v386, %v385
    %v400 = vpack.c.b16 %v388, %v387
    %v401 = vpack.c.b16 %v390, %v389
    %v402 = vpack.c.b16 %v392, %v391
    %v403 = vpack.c.b16 %v394, %v393
    %v404 = vpack.c.b16 %v396, %v395
    %413 = vmatprep.subr.bf16.mxu0 0
    %414 = vmatpush1.bf16.msra.mxu0 %v397
    %415 = vmatprep.subr.bf16.mxu0 0
    %416 = vmatpush1.bf16.msra.mxu0 %v398
    %417 = vmatprep.subr.bf16.mxu0 0
    %418 = vmatpush1.bf16.msra.mxu0 %v399
    %419 = vmatprep.subr.bf16.mxu0 0
    %420 = vmatpush1.bf16.msra.mxu0 %v400
    %421 = vmatprep.subr.bf16.mxu0 0
    %422 = vmatpush1.bf16.msra.mxu0 %v401
    %423 = vmatprep.subr.bf16.mxu0 0
    %424 = vmatpush1.bf16.msra.mxu0 %v402
    %425 = vmatprep.subr.bf16.mxu0 0
    %426 = vmatpush1.bf16.msra.mxu0 %v403
    %427 = vmatprep.subr.bf16.mxu0 0
    %428 = vmatpush1.bf16.msra.mxu0 %v404
    %429 = vmatprep.subr.bf16.mxu0 0
    %430 = vmatpush1.bf16.msra.mxu0 0
    %431 = vmatprep.subr.bf16.mxu0 0
    %432 = vmatpush1.bf16.msra.mxu0 0
    %433 = vmatprep.subr.bf16.mxu0 0
    %434 = vmatpush1.bf16.msra.mxu0 0
    %435 = vmatprep.subr.bf16.mxu0 0
    %436 = vmatpush1.bf16.msra.mxu0 0
    %437 = vmatprep.subr.bf16.mxu0 0
    %438 = vmatpush1.bf16.msra.mxu0 0
    %439 = vmatprep.subr.bf16.mxu0 0
    %440 = vmatpush1.bf16.msra.mxu0 0
    %441 = vmatprep.subr.bf16.mxu0 0
    %442 = vmatpush1.bf16.msra.mxu0 0
    %443 = vmatprep.subr.bf16.mxu0 0
    %444 = vmatpush1.bf16.msra.mxu0 0
    %445 = vmatprep.mubr.bf16.mxu0 0
    %446 = vmatmul.mubr.bf16.gmra.mrb[0].mxu0 %v301
    %v447 = vpop.f32.mrb[0].mxu0
    %v448 = vadd.f32 %v171, %v447
    %v449 = vpop.f32.mrb[0].mxu0
    %v450 = vpop.f32.mrb[0].mxu0
    %v451 = vadd.f32 %v171, %v450
    %v452 = vpop.f32.mrb[0].mxu0
    %453 = vmatprep.mubr.bf16.mxu0 0
    %454 = vmatmul.mubr.bf16.gmra.mrb[0].mxu0 %v302
    %v455 = vpop.f32.mrb[0].mxu0
    %v456 = vadd.f32 %v171, %v455
    %v457 = vpop.f32.mrb[0].mxu0
    %v458 = vpop.f32.mrb[0].mxu0
    %v459 = vadd.f32 %v171, %v458
    %v460 = vpop.f32.mrb[0].mxu0
    %461 = vmatprep.mubr.bf16.mxu0 0
    %462 = vmatmul.mubr.bf16.gmra.mrb[0].mxu0 %v303
    %v463 = vpop.f32.mrb[0].mxu0
    %v464 = vadd.f32 %v171, %v463
    %v465 = vpop.f32.mrb[0].mxu0
    %v466 = vpop.f32.mrb[0].mxu0
    %v467 = vadd.f32 %v171, %v466
    %v468 = vpop.f32.mrb[0].mxu0
    %469 = vmatprep.mubr.bf16.mxu0 0
    %470 = vmatmul.mubr.bf16.gmra.mrb[0].mxu0 %v304
    %v471 = vpop.f32.mrb[0].mxu0
    %v472 = vadd.f32 %v171, %v471
    %v473 = vpop.f32.mrb[0].mxu0
    %v474 = vpop.f32.mrb[0].mxu0
    %v475 = vadd.f32 %v171, %v474
    %v476 = vpop.f32.mrb[0].mxu0
    %477 = vmatprep.mubr.bf16.mxu0 0
    %478 = vmatmul.mubr.bf16.gmra.mrb[0].mxu0 %v305
    %v479 = vpop.f32.mrb[0].mxu0
    %v480 = vadd.f32 %v171, %v479
    %v481 = vpop.f32.mrb[0].mxu0
    %v482 = vpop.f32.mrb[0].mxu0
    %v483 = vadd.f32 %v171, %v482
    %v484 = vpop.f32.mrb[0].mxu0
    %485 = vmatprep.mubr.bf16.mxu0 0
    %486 = vmatmul.mubr.bf16.gmra.mrb[0].mxu0 %v306
    %v487 = vpop.f32.mrb[0].mxu0
    %v488 = vadd.f32 %v171, %v487
    %v489 = vpop.f32.mrb[0].mxu0
    %v490 = vpop.f32.mrb[0].mxu0
    %v491 = vadd.f32 %v171, %v490
    %v492 = vpop.f32.mrb[0].mxu0
    %493 = vmatprep.mubr.bf16.mxu0 0
    %494 = vmatmul.mubr.bf16.gmra.mrb[0].mxu0 %v307
    %v495 = vpop.f32.mrb[0].mxu0
    %v496 = vadd.f32 %v171, %v495
    %v497 = vpop.f32.mrb[0].mxu0
    %v498 = vpop.f32.mrb[0].mxu0
    %v499 = vadd.f32 %v171, %v498
    %v500 = vpop.f32.mrb[0].mxu0
    %501 = vmatprep.mubr.bf16.mxu0 0
    %502 = vmatmul.mubr.bf16.gmra.mrb[0].mxu0 %v308
    %v503 = vpop.f32.mrb[0].mxu0
    %v504 = vadd.f32 %v171, %v503
    %v505 = vpop.f32.mrb[0].mxu0
    %v506 = vpop.f32.mrb[0].mxu0
    %v507 = vadd.f32 %v171, %v506
    %v508 = vpop.f32.mrb[0].mxu0
    %509 = vmatprep.mubr.bf16.mxu0 0
    %510 = vmatmul.mubr.bf16.gmra.mrb[0].mxu0 %v309
    %v511 = vpop.f32.mrb[0].mxu0
    %v512 = vadd.f32 %v171, %v511
    %v513 = vpop.f32.mrb[0].mxu0
    %v514 = vpop.f32.mrb[0].mxu0
    %v515 = vadd.f32 %v171, %v514
    %v516 = vpop.f32.mrb[0].mxu0
    %517 = vmatprep.mubr.bf16.mxu0 0
    %518 = vmatmul.mubr.bf16.gmra.mrb[0].mxu0 %v310
    %v519 = vpop.f32.mrb[0].mxu0
    %v520 = vadd.f32 %v171, %v519
    %v521 = vpop.f32.mrb[0].mxu0
    %v522 = vpop.f32.mrb[0].mxu0
    %v523 = vadd.f32 %v171, %v522
    %v524 = vpop.f32.mrb[0].mxu0
    %525 = vmatprep.mubr.bf16.mxu0 0
    %526 = vmatmul.mubr.bf16.gmra.mrb[0].mxu0 %v311
    %v527 = vpop.f32.mrb[0].mxu0
    %v528 = vadd.f32 %v171, %v527
    %v529 = vpop.f32.mrb[0].mxu0
    %v530 = vpop.f32.mrb[0].mxu0
    %v531 = vadd.f32 %v171, %v530
    %v532 = vpop.f32.mrb[0].mxu0
    %533 = vmatprep.mubr.bf16.mxu0 0
    %534 = vmatmul.mubr.bf16.gmra.mrb[0].mxu0 %v312
    %v535 = vpop.f32.mrb[0].mxu0
    %v536 = vadd.f32 %v171, %v535
    %v537 = vpop.f32.mrb[0].mxu0
    %v538 = vpop.f32.mrb[0].mxu0
    %v539 = vadd.f32 %v171, %v538
    %v540 = vpop.f32.mrb[0].mxu0
    %541 = vmatprep.mubr.bf16.mxu0 0
    %542 = vmatmul.mubr.bf16.gmra.mrb[0].mxu0 %v313
    %v543 = vpop.f32.mrb[0].mxu0
    %v544 = vadd.f32 %v171, %v543
    %v545 = vpop.f32.mrb[0].mxu0
    %v546 = vpop.f32.mrb[0].mxu0
    %v547 = vadd.f32 %v171, %v546
    %v548 = vpop.f32.mrb[0].mxu0
    %549 = vmatprep.mubr.bf16.mxu0 0
    %550 = vmatmul.mubr.bf16.gmra.mrb[0].mxu0 %v314
    %v551 = vpop.f32.mrb[0].mxu0
    %v552 = vadd.f32 %v171, %v551
    %v553 = vpop.f32.mrb[0].mxu0
    %v554 = vpop.f32.mrb[0].mxu0
    %v555 = vadd.f32 %v171, %v554
    %v556 = vpop.f32.mrb[0].mxu0
    %557 = vmatprep.mubr.bf16.mxu0 0
    %558 = vmatmul.mubr.bf16.gmra.mrb[0].mxu0 %v315
    %v559 = vpop.f32.mrb[0].mxu0
    %v560 = vadd.f32 %v171, %v559
    %v561 = vpop.f32.mrb[0].mxu0
    %v562 = vpop.f32.mrb[0].mxu0
    %v563 = vadd.f32 %v171, %v562
    %v564 = vpop.f32.mrb[0].mxu0
    %565 = vmatprep.mubr.bf16.mxu0 0
    %566 = vmatmul.mubr.bf16.gmra.mrb[0].mxu0 %v316
    %v567 = vpop.f32.mrb[0].mxu0
    %v568 = vadd.f32 %v171, %v567
    %v569 = vpop.f32.mrb[0].mxu0
    %v570 = vpop.f32.mrb[0].mxu0
    %v571 = vadd.f32 %v171, %v570
    %v572 = vpop.f32.mrb[0].mxu0
    %573 = vmatprep.mubr.bf16.mxu0 0
    %574 = vmatmul.mubr.bf16.gmra.mrb[0].mxu0 %v317
    %v575 = vpop.f32.mrb[0].mxu0
    %v576 = vadd.f32 %v171, %v575
    %v577 = vpop.f32.mrb[0].mxu0
    %v578 = vpop.f32.mrb[0].mxu0
    %v579 = vadd.f32 %v171, %v578
    %v580 = vpop.f32.mrb[0].mxu0
    %581 = vmatprep.mubr.bf16.mxu0 0
    %582 = vmatmul.mubr.bf16.gmra.mrb[0].mxu0 %v318
    %v583 = vpop.f32.mrb[0].mxu0
    %v584 = vadd.f32 %v171, %v583
    %v585 = vpop.f32.mrb[0].mxu0
    %v586 = vpop.f32.mrb[0].mxu0
    %v587 = vadd.f32 %v171, %v586
    %v588 = vpop.f32.mrb[0].mxu0
    %589 = vmatprep.mubr.bf16.mxu0 0
    %590 = vmatmul.mubr.bf16.gmra.mrb[0].mxu0 %v319
    %v591 = vpop.f32.mrb[0].mxu0
    %v592 = vadd.f32 %v171, %v591
    %v593 = vpop.f32.mrb[0].mxu0
    %v594 = vpop.f32.mrb[0].mxu0
    %v595 = vadd.f32 %v171, %v594
    %v596 = vpop.f32.mrb[0].mxu0
    %597 = vmatprep.mubr.bf16.mxu0 0
    %598 = vmatmul.mubr.bf16.gmra.mrb[0].mxu0 %v320
    %v599 = vpop.f32.mrb[0].mxu0
    %v600 = vadd.f32 %v171, %v599
    %v601 = vpop.f32.mrb[0].mxu0
    %v602 = vpop.f32.mrb[0].mxu0
    %v603 = vadd.f32 %v171, %v602
    %v604 = vpop.f32.mrb[0].mxu0
    %605 = vmatprep.mubr.bf16.mxu0 0
    %606 = vmatmul.mubr.bf16.gmra.mrb[0].mxu0 %v321
    %v607 = vpop.f32.mrb[0].mxu0
    %v608 = vadd.f32 %v171, %v607
    %v609 = vpop.f32.mrb[0].mxu0
    %v610 = vpop.f32.mrb[0].mxu0
    %v611 = vadd.f32 %v171, %v610
    %v612 = vpop.f32.mrb[0].mxu0
    %613 = vmatprep.mubr.bf16.mxu0 0
    %614 = vmatmul.mubr.bf16.gmra.mrb[0].mxu0 %v322
    %v615 = vpop.f32.mrb[0].mxu0
    %v616 = vadd.f32 %v171, %v615
    %v617 = vpop.f32.mrb[0].mxu0
    %v618 = vpop.f32.mrb[0].mxu0
    %v619 = vadd.f32 %v171, %v618
    %v620 = vpop.f32.mrb[0].mxu0
    %621 = vmatprep.mubr.bf16.mxu0 0
    %622 = vmatmul.mubr.bf16.gmra.mrb[0].mxu0 %v323
    %v623 = vpop.f32.mrb[0].mxu0
    %v624 = vadd.f32 %v171, %v623
    %v625 = vpop.f32.mrb[0].mxu0
    %v626 = vpop.f32.mrb[0].mxu0
    %v627 = vadd.f32 %v171, %v626
    %v628 = vpop.f32.mrb[0].mxu0
    %629 = vmatprep.mubr.bf16.mxu0 0
    %630 = vmatmul.mubr.bf16.gmra.mrb[0].mxu0 %v324
    %v631 = vpop.f32.mrb[0].mxu0
    %v632 = vadd.f32 %v171, %v631
    %v633 = vpop.f32.mrb[0].mxu0
    %v634 = vpop.f32.mrb[0].mxu0
    %v635 = vadd.f32 %v171, %v634
    %v636 = vpop.f32.mrb[0].mxu0
    %637 = vmatprep.mubr.bf16.mxu0 0
    %638 = vmatmul.mubr.bf16.gmra.mrb[0].mxu0 %v325
    %v639 = vpop.f32.mrb[0].mxu0
    %v640 = vadd.f32 %v171, %v639
    %v641 = vpop.f32.mrb[0].mxu0
    %v642 = vpop.f32.mrb[0].mxu0
    %v643 = vadd.f32 %v171, %v642
    %v644 = vpop.f32.mrb[0].mxu0
    %645 = vmatprep.mubr.bf16.mxu0 0
    %646 = vmatmul.mubr.bf16.gmra.mrb[0].mxu0 %v326
    %v647 = vpop.f32.mrb[0].mxu0
    %v648 = vadd.f32 %v171, %v647
    %v649 = vpop.f32.mrb[0].mxu0
    %v650 = vpop.f32.mrb[0].mxu0
    %v651 = vadd.f32 %v171, %v650
    %v652 = vpop.f32.mrb[0].mxu0
    %653 = vmatprep.mubr.bf16.mxu0 0
    %654 = vmatmul.mubr.bf16.gmra.mrb[0].mxu0 %v327
    %v655 = vpop.f32.mrb[0].mxu0
    %v656 = vadd.f32 %v171, %v655
    %v657 = vpop.f32.mrb[0].mxu0
    %v658 = vpop.f32.mrb[0].mxu0
    %v659 = vadd.f32 %v171, %v658
    %v660 = vpop.f32.mrb[0].mxu0
    %661 = vmatprep.mubr.bf16.mxu0 0
    %662 = vmatmul.mubr.bf16.gmra.mrb[0].mxu0 %v328
    %v663 = vpop.f32.mrb[0].mxu0
    %v664 = vadd.f32 %v171, %v663
    %v665 = vpop.f32.mrb[0].mxu0
    %v666 = vpop.f32.mrb[0].mxu0
    %v667 = vadd.f32 %v171, %v666
    %v668 = vpop.f32.mrb[0].mxu0
    %669 = vmatprep.mubr.bf16.mxu0 0
    %670 = vmatmul.mubr.bf16.gmra.mrb[0].mxu0 %v329
    %v671 = vpop.f32.mrb[0].mxu0
    %v672 = vadd.f32 %v171, %v671
    %v673 = vpop.f32.mrb[0].mxu0
    %v674 = vpop.f32.mrb[0].mxu0
    %v675 = vadd.f32 %v171, %v674
    %v676 = vpop.f32.mrb[0].mxu0
    %677 = vmatprep.mubr.bf16.mxu0 0
    %678 = vmatmul.mubr.bf16.gmra.mrb[0].mxu0 %v330
    %v679 = vpop.f32.mrb[0].mxu0
    %v680 = vadd.f32 %v171, %v679
    %v681 = vpop.f32.mrb[0].mxu0
    %v682 = vpop.f32.mrb[0].mxu0
    %v683 = vadd.f32 %v171, %v682
    %v684 = vpop.f32.mrb[0].mxu0
    %685 = vmatprep.mubr.bf16.mxu0 0
    %686 = vmatmul.mubr.bf16.gmra.mrb[0].mxu0 %v331
    %v687 = vpop.f32.mrb[0].mxu0
    %v688 = vadd.f32 %v171, %v687
    %v689 = vpop.f32.mrb[0].mxu0
    %v690 = vpop.f32.mrb[0].mxu0
    %v691 = vadd.f32 %v171, %v690
    %v692 = vpop.f32.mrb[0].mxu0
    %693 = vmatprep.mubr.bf16.mxu0 0
    %694 = vmatmul.mubr.bf16.gmra.mrb[0].mxu0 %v332
    %v695 = vpop.f32.mrb[0].mxu0
    %v696 = vadd.f32 %v171, %v695
    %v697 = vpop.f32.mrb[0].mxu0
    %v698 = vpop.f32.mrb[0].mxu0
    %v699 = vadd.f32 %v171, %v698
    %v700 = vpop.f32.mrb[0].mxu0
    %701 = vdwg.mxu0
    %v702 = vmul.f32 %v448, 0.5
    %v703 = vmul.f32 %v451, 0.5
    %v704 = vmul.f32 %v456, 0.5
    %v705 = vmul.f32 %v459, 0.5
    %v706 = vmul.f32 %v464, 0.5
    %v707 = vmul.f32 %v467, 0.5
    %v708 = vmul.f32 %v472, 0.5
    %v709 = vmul.f32 %v475, 0.5
    %v710 = vmul.f32 %v480, 0.5
    %v711 = vmul.f32 %v483, 0.5
    %v712 = vmul.f32 %v488, 0.5
    %v713 = vmul.f32 %v491, 0.5
    %v714 = vmul.f32 %v496, 0.5
    %v715 = vmul.f32 %v499, 0.5
    %v716 = vmul.f32 %v504, 0.5
    %v717 = vmul.f32 %v507, 0.5
    %v718 = vmul.f32 %v512, 0.5
    %v719 = vmul.f32 %v515, 0.5
    %v720 = vmul.f32 %v520, 0.5
    %v721 = vmul.f32 %v523, 0.5
    %v722 = vmul.f32 %v528, 0.5
    %v723 = vmul.f32 %v531, 0.5
    %v724 = vmul.f32 %v536, 0.5
    %v725 = vmul.f32 %v539, 0.5
    %v726 = vmul.f32 %v544, 0.5
    %v727 = vmul.f32 %v547, 0.5
    %v728 = vmul.f32 %v552, 0.5
    %v729 = vmul.f32 %v555, 0.5
    %v730 = vmul.f32 %v560, 0.5
    %v731 = vmul.f32 %v563, 0.5
    %v732 = vmul.f32 %v568, 0.5
    %v733 = vmul.f32 %v571, 0.5
    %v734 = vmul.f32 %v576, 0.5
    %v735 = vmul.f32 %v579, 0.5
    %v736 = vmul.f32 %v584, 0.5
    %v737 = vmul.f32 %v587, 0.5
    %v738 = vmul.f32 %v592, 0.5
    %v739 = vmul.f32 %v595, 0.5
    %v740 = vmul.f32 %v600, 0.5
    %v741 = vmul.f32 %v603, 0.5
    %v742 = vmul.f32 %v608, 0.5
    %v743 = vmul.f32 %v611, 0.5
    %v744 = vmul.f32 %v616, 0.5
    %v745 = vmul.f32 %v619, 0.5
    %v746 = vmul.f32 %v624, 0.5
    %v747 = vmul.f32 %v627, 0.5
    %v748 = vmul.f32 %v632, 0.5
    %v749 = vmul.f32 %v635, 0.5
    %v750 = vmul.f32 %v640, 0.5
    %v751 = vmul.f32 %v643, 0.5
    %v752 = vmul.f32 %v648, 0.5
    %v753 = vmul.f32 %v651, 0.5
    %v754 = vmul.f32 %v656, 0.5
    %v755 = vmul.f32 %v659, 0.5
    %v756 = vmul.f32 %v664, 0.5
    %v757 = vmul.f32 %v667, 0.5
    %v758 = vmul.f32 %v672, 0.5
    %v759 = vmul.f32 %v675, 0.5
    %v760 = vmul.f32 %v680, 0.5
    %v761 = vmul.f32 %v683, 0.5
    %v762 = vmul.f32 %v688, 0.5
    %v763 = vmul.f32 %v691, 0.5
    %v764 = vmul.f32 %v696, 0.5
    %v765 = vmul.f32 %v699, 0.5
    %v766 = vmul.f32 %v448, 0.044715
    %v767 = vmul.f32 %v451, 0.044715
    %v768 = vmul.f32 %v456, 0.044715
    %v769 = vmul.f32 %v459, 0.044715
    %v770 = vmul.f32 %v464, 0.044715
    %v771 = vmul.f32 %v467, 0.044715
    %v772 = vmul.f32 %v472, 0.044715
    %v773 = vmul.f32 %v475, 0.044715
    %v774 = vmul.f32 %v480, 0.044715
    %v775 = vmul.f32 %v483, 0.044715
    %v776 = vmul.f32 %v488, 0.044715
    %v777 = vmul.f32 %v491, 0.044715
    %v778 = vmul.f32 %v496, 0.044715
    %v779 = vmul.f32 %v499, 0.044715
    %v780 = vmul.f32 %v504, 0.044715
    %v781 = vmul.f32 %v507, 0.044715
    %v782 = vmul.f32 %v512, 0.044715
    %v783 = vmul.f32 %v515, 0.044715
    %v784 = vmul.f32 %v520, 0.044715
    %v785 = vmul.f32 %v523, 0.044715
    %v786 = vmul.f32 %v528, 0.044715
    %v787 = vmul.f32 %v531, 0.044715
    %v788 = vmul.f32 %v536, 0.044715
    %v789 = vmul.f32 %v539, 0.044715
    %v790 = vmul.f32 %v544, 0.044715
    %v791 = vmul.f32 %v547, 0.044715
    %v792 = vmul.f32 %v552, 0.044715
    %v793 = vmul.f32 %v555, 0.044715
    %v794 = vmul.f32 %v560, 0.044715
    %v795 = vmul.f32 %v563, 0.044715
    %v796 = vmul.f32 %v568, 0.044715
    %v797 = vmul.f32 %v571, 0.044715
    %v798 = vmul.f32 %v576, 0.044715
    %v799 = vmul.f32 %v579, 0.044715
    %v800 = vmul.f32 %v584, 0.044715
    %v801 = vmul.f32 %v587, 0.044715
    %v802 = vmul.f32 %v592, 0.044715
    %v803 = vmul.f32 %v595, 0.044715
    %v804 = vmul.f32 %v600, 0.044715
    %v805 = vmul.f32 %v603, 0.044715
    %v806 = vmul.f32 %v608, 0.044715
    %v807 = vmul.f32 %v611, 0.044715
    %v808 = vmul.f32 %v616, 0.044715
    %v809 = vmul.f32 %v619, 0.044715
    %v810 = vmul.f32 %v624, 0.044715
    %v811 = vmul.f32 %v627, 0.044715
    %v812 = vmul.f32 %v632, 0.044715
    %v813 = vmul.f32 %v635, 0.044715
    %v814 = vmul.f32 %v640, 0.044715
    %v815 = vmul.f32 %v643, 0.044715
    %v816 = vmul.f32 %v648, 0.044715
    %v817 = vmul.f32 %v651, 0.044715
    %v818 = vmul.f32 %v656, 0.044715
    %v819 = vmul.f32 %v659, 0.044715
    %v820 = vmul.f32 %v664, 0.044715
    %v821 = vmul.f32 %v667, 0.044715
    %v822 = vmul.f32 %v672, 0.044715
    %v823 = vmul.f32 %v675, 0.044715
    %v824 = vmul.f32 %v680, 0.044715
    %v825 = vmul.f32 %v683, 0.044715
    %v826 = vmul.f32 %v688, 0.044715
    %v827 = vmul.f32 %v691, 0.044715
    %v828 = vmul.f32 %v696, 0.044715
    %v829 = vmul.f32 %v699, 0.044715
    %v830 = vmul.f32 %v766, %v448
    %v831 = vmul.f32 %v767, %v451
    %v832 = vmul.f32 %v768, %v456
    %v833 = vmul.f32 %v769, %v459
    %v834 = vmul.f32 %v770, %v464
    %v835 = vmul.f32 %v771, %v467
    %v836 = vmul.f32 %v772, %v472
    %v837 = vmul.f32 %v773, %v475
    %v838 = vmul.f32 %v774, %v480
    %v839 = vmul.f32 %v775, %v483
    %v840 = vmul.f32 %v776, %v488
    %v841 = vmul.f32 %v777, %v491
    %v842 = vmul.f32 %v778, %v496
    %v843 = vmul.f32 %v779, %v499
    %v844 = vmul.f32 %v780, %v504
    %v845 = vmul.f32 %v781, %v507
    %v846 = vmul.f32 %v782, %v512
    %v847 = vmul.f32 %v783, %v515
    %v848 = vmul.f32 %v784, %v520
    %v849 = vmul.f32 %v785, %v523
    %v850 = vmul.f32 %v786, %v528
    %v851 = vmul.f32 %v787, %v531
    %v852 = vmul.f32 %v788, %v536
    %v853 = vmul.f32 %v789, %v539
    %v854 = vmul.f32 %v790, %v544
    %v855 = vmul.f32 %v791, %v547
    %v856 = vmul.f32 %v792, %v552
    %v857 = vmul.f32 %v793, %v555
    %v858 = vmul.f32 %v794, %v560
    %v859 = vmul.f32 %v795, %v563
    %v860 = vmul.f32 %v796, %v568
    %v861 = vmul.f32 %v797, %v571
    %v862 = vmul.f32 %v798, %v576
    %v863 = vmul.f32 %v799, %v579
    %v864 = vmul.f32 %v800, %v584
    %v865 = vmul.f32 %v801, %v587
    %v866 = vmul.f32 %v802, %v592
    %v867 = vmul.f32 %v803, %v595
    %v868 = vmul.f32 %v804, %v600
    %v869 = vmul.f32 %v805, %v603
    %v870 = vmul.f32 %v806, %v608
    %v871 = vmul.f32 %v807, %v611
    %v872 = vmul.f32 %v808, %v616
    %v873 = vmul.f32 %v809, %v619
    %v874 = vmul.f32 %v810, %v624
    %v875 = vmul.f32 %v811, %v627
    %v876 = vmul.f32 %v812, %v632
    %v877 = vmul.f32 %v813, %v635
    %v878 = vmul.f32 %v814, %v640
    %v879 = vmul.f32 %v815, %v643
    %v880 = vmul.f32 %v816, %v648
    %v881 = vmul.f32 %v817, %v651
    %v882 = vmul.f32 %v818, %v656
    %v883 = vmul.f32 %v819, %v659
    %v884 = vmul.f32 %v820, %v664
    %v885 = vmul.f32 %v821, %v667
    %v886 = vmul.f32 %v822, %v672
    %v887 = vmul.f32 %v823, %v675
    %v888 = vmul.f32 %v824, %v680
    %v889 = vmul.f32 %v825, %v683
    %v890 = vmul.f32 %v826, %v688
    %v891 = vmul.f32 %v827, %v691
    %v892 = vmul.f32 %v828, %v696
    %v893 = vmul.f32 %v829, %v699
    %v894 = vmul.f32 %v830, %v448
    %v895 = vmul.f32 %v831, %v451
    %v896 = vmul.f32 %v832, %v456
    %v897 = vmul.f32 %v833, %v459
    %v898 = vmul.f32 %v834, %v464
    %v899 = vmul.f32 %v835, %v467
    %v900 = vmul.f32 %v836, %v472
    %v901 = vmul.f32 %v837, %v475
    %v902 = vmul.f32 %v838, %v480
    %v903 = vmul.f32 %v839, %v483
    %v904 = vmul.f32 %v840, %v488
    %v905 = vmul.f32 %v841, %v491
    %v906 = vmul.f32 %v842, %v496
    %v907 = vmul.f32 %v843, %v499
    %v908 = vmul.f32 %v844, %v504
    %v909 = vmul.f32 %v845, %v507
    %v910 = vmul.f32 %v846, %v512
    %v911 = vmul.f32 %v847, %v515
    %v912 = vmul.f32 %v848, %v520
    %v913 = vmul.f32 %v849, %v523
    %v914 = vmul.f32 %v850, %v528
    %v915 = vmul.f32 %v851, %v531
    %v916 = vmul.f32 %v852, %v536
    %v917 = vmul.f32 %v853, %v539
    %v918 = vmul.f32 %v854, %v544
    %v919 = vmul.f32 %v855, %v547
    %v920 = vmul.f32 %v856, %v552
    %v921 = vmul.f32 %v857, %v555
    %v922 = vmul.f32 %v858, %v560
    %v923 = vmul.f32 %v859, %v563
    %v924 = vmul.f32 %v860, %v568
    %v925 = vmul.f32 %v861, %v571
    %v926 = vmul.f32 %v862, %v576
    %v927 = vmul.f32 %v863, %v579
    %v928 = vmul.f32 %v864, %v584
    %v929 = vmul.f32 %v865, %v587
    %v930 = vmul.f32 %v866, %v592
    %v931 = vmul.f32 %v867, %v595
    %v932 = vmul.f32 %v868, %v600
    %v933 = vmul.f32 %v869, %v603
    %v934 = vmul.f32 %v870, %v608
    %v935 = vmul.f32 %v871, %v611
    %v936 = vmul.f32 %v872, %v616
    %v937 = vmul.f32 %v873, %v619
    %v938 = vmul.f32 %v874, %v624
    %v939 = vmul.f32 %v875, %v627
    %v940 = vmul.f32 %v876, %v632
    %v941 = vmul.f32 %v877, %v635
    %v942 = vmul.f32 %v878, %v640
    %v943 = vmul.f32 %v879, %v643
    %v944 = vmul.f32 %v880, %v648
    %v945 = vmul.f32 %v881, %v651
    %v946 = vmul.f32 %v882, %v656
    %v947 = vmul.f32 %v883, %v659
    %v948 = vmul.f32 %v884, %v664
    %v949 = vmul.f32 %v885, %v667
    %v950 = vmul.f32 %v886, %v672
    %v951 = vmul.f32 %v887, %v675
    %v952 = vmul.f32 %v888, %v680
    %v953 = vmul.f32 %v889, %v683
    %v954 = vmul.f32 %v890, %v688
    %v955 = vmul.f32 %v891, %v691
    %v956 = vmul.f32 %v892, %v696
    %v957 = vmul.f32 %v893, %v699
    %v958 = vadd.f32 %v448, %v894
    %v959 = vadd.f32 %v451, %v895
    %v960 = vadd.f32 %v456, %v896
    %v961 = vadd.f32 %v459, %v897
    %v962 = vadd.f32 %v464, %v898
    %v963 = vadd.f32 %v467, %v899
    %v964 = vadd.f32 %v472, %v900
    %v965 = vadd.f32 %v475, %v901
    %v966 = vadd.f32 %v480, %v902
    %v967 = vadd.f32 %v483, %v903
    %v968 = vadd.f32 %v488, %v904
    %v969 = vadd.f32 %v491, %v905
    %v970 = vadd.f32 %v496, %v906
    %v971 = vadd.f32 %v499, %v907
    %v972 = vadd.f32 %v504, %v908
    %v973 = vadd.f32 %v507, %v909
    %v974 = vadd.f32 %v512, %v910
    %v975 = vadd.f32 %v515, %v911
    %v976 = vadd.f32 %v520, %v912
    %v977 = vadd.f32 %v523, %v913
    %v978 = vadd.f32 %v528, %v914
    %v979 = vadd.f32 %v531, %v915
    %v980 = vadd.f32 %v536, %v916
    %v981 = vadd.f32 %v539, %v917
    %v982 = vadd.f32 %v544, %v918
    %v983 = vadd.f32 %v547, %v919
    %v984 = vadd.f32 %v552, %v920
    %v985 = vadd.f32 %v555, %v921
    %v986 = vadd.f32 %v560, %v922
    %v987 = vadd.f32 %v563, %v923
    %v988 = vadd.f32 %v568, %v924
    %v989 = vadd.f32 %v571, %v925
    %v990 = vadd.f32 %v576, %v926
    %v991 = vadd.f32 %v579, %v927
    %v992 = vadd.f32 %v584, %v928
    %v993 = vadd.f32 %v587, %v929
    %v994 = vadd.f32 %v592, %v930
    %v995 = vadd.f32 %v595, %v931
    %v996 = vadd.f32 %v600, %v932
    %v997 = vadd.f32 %v603, %v933
    %v998 = vadd.f32 %v608, %v934
    %v999 = vadd.f32 %v611, %v935
    %v1000 = vadd.f32 %v616, %v936
    %v1001 = vadd.f32 %v619, %v937
    %v1002 = vadd.f32 %v624, %v938
    %v1003 = vadd.f32 %v627, %v939
    %v1004 = vadd.f32 %v632, %v940
    %v1005 = vadd.f32 %v635, %v941
    %v1006 = vadd.f32 %v640, %v942
    %v1007 = vadd.f32 %v643, %v943
    %v1008 = vadd.f32 %v648, %v944
    %v1009 = vadd.f32 %v651, %v945
    %v1010 = vadd.f32 %v656, %v946
    %v1011 = vadd.f32 %v659, %v947
    %v1012 = vadd.f32 %v664, %v948
    %v1013 = vadd.f32 %v667, %v949
    %v1014 = vadd.f32 %v672, %v950
    %v1015 = vadd.f32 %v675, %v951
    %v1016 = vadd.f32 %v680, %v952
    %v1017 = vadd.f32 %v683, %v953
    %v1018 = vadd.f32 %v688, %v954
    %v1019 = vadd.f32 %v691, %v955
    %v1020 = vadd.f32 %v696, %v956
    %v1021 = vadd.f32 %v699, %v957
    %v1022 = vmul.f32 %v958, 0.7978846
    %v1023 = vmul.f32 %v959, 0.7978846
    %v1024 = vmul.f32 %v960, 0.7978846
    %v1025 = vmul.f32 %v961, 0.7978846
    %v1026 = vmul.f32 %v962, 0.7978846
    %v1027 = vmul.f32 %v963, 0.7978846
    %v1028 = vmul.f32 %v964, 0.7978846
    %v1029 = vmul.f32 %v965, 0.7978846
    %v1030 = vmul.f32 %v966, 0.7978846
    %v1031 = vmul.f32 %v967, 0.7978846
    %v1032 = vmul.f32 %v968, 0.7978846
    %v1033 = vmul.f32 %v969, 0.7978846
    %v1034 = vmul.f32 %v970, 0.7978846
    %v1035 = vmul.f32 %v971, 0.7978846
    %v1036 = vmul.f32 %v972, 0.7978846
    %v1037 = vmul.f32 %v973, 0.7978846
    %v1038 = vmul.f32 %v974, 0.7978846
    %v1039 = vmul.f32 %v975, 0.7978846
    %v1040 = vmul.f32 %v976, 0.7978846
    %v1041 = vmul.f32 %v977, 0.7978846
    %v1042 = vmul.f32 %v978, 0.7978846
    %v1043 = vmul.f32 %v979, 0.7978846
    %v1044 = vmul.f32 %v980, 0.7978846
    %v1045 = vmul.f32 %v981, 0.7978846
    %v1046 = vmul.f32 %v982, 0.7978846
    %v1047 = vmul.f32 %v983, 0.7978846
    %v1048 = vmul.f32 %v984, 0.7978846
    %v1049 = vmul.f32 %v985, 0.7978846
    %v1050 = vmul.f32 %v986, 0.7978846
    %v1051 = vmul.f32 %v987, 0.7978846
    %v1052 = vmul.f32 %v988, 0.7978846
    %v1053 = vmul.f32 %v989, 0.7978846
    %v1054 = vmul.f32 %v990, 0.7978846
    %v1055 = vmul.f32 %v991, 0.7978846
    %v1056 = vmul.f32 %v992, 0.7978846
    %v1057 = vmul.f32 %v993, 0.7978846
    %v1058 = vmul.f32 %v994, 0.7978846
    %v1059 = vmul.f32 %v995, 0.7978846
    %v1060 = vmul.f32 %v996, 0.7978846
    %v1061 = vmul.f32 %v997, 0.7978846
    %v1062 = vmul.f32 %v998, 0.7978846
    %v1063 = vmul.f32 %v999, 0.7978846
    %v1064 = vmul.f32 %v1000, 0.7978846
    %v1065 = vmul.f32 %v1001, 0.7978846
    %v1066 = vmul.f32 %v1002, 0.7978846
    %v1067 = vmul.f32 %v1003, 0.7978846
    %v1068 = vmul.f32 %v1004, 0.7978846
    %v1069 = vmul.f32 %v1005, 0.7978846
    %v1070 = vmul.f32 %v1006, 0.7978846
    %v1071 = vmul.f32 %v1007, 0.7978846
    %v1072 = vmul.f32 %v1008, 0.7978846
    %v1073 = vmul.f32 %v1009, 0.7978846
    %v1074 = vmul.f32 %v1010, 0.7978846
    %v1075 = vmul.f32 %v1011, 0.7978846
    %v1076 = vmul.f32 %v1012, 0.7978846
    %v1077 = vmul.f32 %v1013, 0.7978846
    %v1078 = vmul.f32 %v1014, 0.7978846
    %v1079 = vmul.f32 %v1015, 0.7978846
    %v1080 = vmul.f32 %v1016, 0.7978846
    %v1081 = vmul.f32 %v1017, 0.7978846
    %v1082 = vmul.f32 %v1018, 0.7978846
    %v1083 = vmul.f32 %v1019, 0.7978846
    %v1084 = vmul.f32 %v1020, 0.7978846
    %v1085 = vmul.f32 %v1021, 0.7978846
    %v1086 = vtanh.pop %v1022
    %v1087 = vtanh.pop %v1023
    %v1088 = vtanh.pop %v1024
    %v1089 = vtanh.pop %v1025
    %v1090 = vtanh.pop %v1026
    %v1091 = vtanh.pop %v1027
    %v1092 = vtanh.pop %v1028
    %v1093 = vtanh.pop %v1029
    %v1094 = vtanh.pop %v1030
    %v1095 = vtanh.pop %v1031
    %v1096 = vtanh.pop %v1032
    %v1097 = vtanh.pop %v1033
    %v1098 = vtanh.pop %v1034
    %v1099 = vtanh.pop %v1035
    %v1100 = vtanh.pop %v1036
    %v1101 = vtanh.pop %v1037
    %v1102 = vtanh.pop %v1038
    %v1103 = vtanh.pop %v1039
    %v1104 = vtanh.pop %v1040
    %v1105 = vtanh.pop %v1041
    %v1106 = vtanh.pop %v1042
    %v1107 = vtanh.pop %v1043
    %v1108 = vtanh.pop %v1044
    %v1109 = vtanh.pop %v1045
    %v1110 = vtanh.pop %v1046
    %v1111 = vtanh.pop %v1047
    %v1112 = vtanh.pop %v1048
    %v1113 = vtanh.pop %v1049
    %v1114 = vtanh.pop %v1050
    %v1115 = vtanh.pop %v1051
    %v1116 = vtanh.pop %v1052
    %v1117 = vtanh.pop %v1053
    %v1118 = vtanh.pop %v1054
    %v1119 = vtanh.pop %v1055
    %v1120 = vtanh.pop %v1056
    %v1121 = vtanh.pop %v1057
    %v1122 = vtanh.pop %v1058
    %v1123 = vtanh.pop %v1059
    %v1124 = vtanh.pop %v1060
    %v1125 = vtanh.pop %v1061
    %v1126 = vtanh.pop %v1062
    %v1127 = vtanh.pop %v1063
    %v1128 = vtanh.pop %v1064
    %v1129 = vtanh.pop %v1065
    %v1130 = vtanh.pop %v1066
    %v1131 = vtanh.pop %v1067
    %v1132 = vtanh.pop %v1068
    %v1133 = vtanh.pop %v1069
    %v1134 = vtanh.pop %v1070
    %v1135 = vtanh.pop %v1071
    %v1136 = vtanh.pop %v1072
    %v1137 = vtanh.pop %v1073
    %v1138 = vtanh.pop %v1074
    %v1139 = vtanh.pop %v1075
    %v1140 = vtanh.pop %v1076
    %v1141 = vtanh.pop %v1077
    %v1142 = vtanh.pop %v1078
    %v1143 = vtanh.pop %v1079
    %v1144 = vtanh.pop %v1080
    %v1145 = vtanh.pop %v1081
    %v1146 = vtanh.pop %v1082
    %v1147 = vtanh.pop %v1083
    %v1148 = vtanh.pop %v1084
    %v1149 = vtanh.pop %v1085
    %v1150 = vadd.f32 %v1086, 1.0
    %v1151 = vadd.f32 %v1087, 1.0
    %v1152 = vadd.f32 %v1088, 1.0
    %v1153 = vadd.f32 %v1089, 1.0
    %v1154 = vadd.f32 %v1090, 1.0
    %v1155 = vadd.f32 %v1091, 1.0
    %v1156 = vadd.f32 %v1092, 1.0
    %v1157 = vadd.f32 %v1093, 1.0
    %v1158 = vadd.f32 %v1094, 1.0
    %v1159 = vadd.f32 %v1095, 1.0
    %v1160 = vadd.f32 %v1096, 1.0
    %v1161 = vadd.f32 %v1097, 1.0
    %v1162 = vadd.f32 %v1098, 1.0
    %v1163 = vadd.f32 %v1099, 1.0
    %v1164 = vadd.f32 %v1100, 1.0
    %v1165 = vadd.f32 %v1101, 1.0
    %v1166 = vadd.f32 %v1102, 1.0
    %v1167 = vadd.f32 %v1103, 1.0
    %v1168 = vadd.f32 %v1104, 1.0
    %v1169 = vadd.f32 %v1105, 1.0
    %v1170 = vadd.f32 %v1106, 1.0
    %v1171 = vadd.f32 %v1107, 1.0
    %v1172 = vadd.f32 %v1108, 1.0
    %v1173 = vadd.f32 %v1109, 1.0
    %v1174 = vadd.f32 %v1110, 1.0
    %v1175 = vadd.f32 %v1111, 1.0
    %v1176 = vadd.f32 %v1112, 1.0
    %v1177 = vadd.f32 %v1113, 1.0
    %v1178 = vadd.f32 %v1114, 1.0
    %v1179 = vadd.f32 %v1115, 1.0
    %v1180 = vadd.f32 %v1116, 1.0
    %v1181 = vadd.f32 %v1117, 1.0
    %v1182 = vadd.f32 %v1118, 1.0
    %v1183 = vadd.f32 %v1119, 1.0
    %v1184 = vadd.f32 %v1120, 1.0
    %v1185 = vadd.f32 %v1121, 1.0
    %v1186 = vadd.f32 %v1122, 1.0
    %v1187 = vadd.f32 %v1123, 1.0
    %v1188 = vadd.f32 %v1124, 1.0
    %v1189 = vadd.f32 %v1125, 1.0
    %v1190 = vadd.f32 %v1126, 1.0
    %v1191 = vadd.f32 %v1127, 1.0
    %v1192 = vadd.f32 %v1128, 1.0
    %v1193 = vadd.f32 %v1129, 1.0
    %v1194 = vadd.f32 %v1130, 1.0
    %v1195 = vadd.f32 %v1131, 1.0
    %v1196 = vadd.f32 %v1132, 1.0
    %v1197 = vadd.f32 %v1133, 1.0
    %v1198 = vadd.f32 %v1134, 1.0
    %v1199 = vadd.f32 %v1135, 1.0
    %v1200 = vadd.f32 %v1136, 1.0
    %v1201 = vadd.f32 %v1137, 1.0
    %v1202 = vadd.f32 %v1138, 1.0
    %v1203 = vadd.f32 %v1139, 1.0
    %v1204 = vadd.f32 %v1140, 1.0
    %v1205 = vadd.f32 %v1141, 1.0
    %v1206 = vadd.f32 %v1142, 1.0
    %v1207 = vadd.f32 %v1143, 1.0
    %v1208 = vadd.f32 %v1144, 1.0
    %v1209 = vadd.f32 %v1145, 1.0
    %v1210 = vadd.f32 %v1146, 1.0
    %v1211 = vadd.f32 %v1147, 1.0
    %v1212 = vadd.f32 %v1148, 1.0
    %v1213 = vadd.f32 %v1149, 1.0
    %v1214 = vmul.f32 %v702, %v1150
    %v1215 = vmul.f32 %v703, %v1151
    %v1216 = vmul.f32 %v704, %v1152
    %v1217 = vmul.f32 %v705, %v1153
    %v1218 = vmul.f32 %v706, %v1154
    %v1219 = vmul.f32 %v707, %v1155
    %v1220 = vmul.f32 %v708, %v1156
    %v1221 = vmul.f32 %v709, %v1157
    %v1222 = vmul.f32 %v710, %v1158
    %v1223 = vmul.f32 %v711, %v1159
    %v1224 = vmul.f32 %v712, %v1160
    %v1225 = vmul.f32 %v713, %v1161
    %v1226 = vmul.f32 %v714, %v1162
    %v1227 = vmul.f32 %v715, %v1163
    %v1228 = vmul.f32 %v716, %v1164
    %v1229 = vmul.f32 %v717, %v1165
    %v1230 = vmul.f32 %v718, %v1166
    %v1231 = vmul.f32 %v719, %v1167
    %v1232 = vmul.f32 %v720, %v1168
    %v1233 = vmul.f32 %v721, %v1169
    %v1234 = vmul.f32 %v722, %v1170
    %v1235 = vmul.f32 %v723, %v1171
    %v1236 = vmul.f32 %v724, %v1172
    %v1237 = vmul.f32 %v725, %v1173
    %v1238 = vmul.f32 %v726, %v1174
    %v1239 = vmul.f32 %v727, %v1175
    %v1240 = vmul.f32 %v728, %v1176
    %v1241 = vmul.f32 %v729, %v1177
    %v1242 = vmul.f32 %v730, %v1178
    %v1243 = vmul.f32 %v731, %v1179
    %v1244 = vmul.f32 %v732, %v1180
    %v1245 = vmul.f32 %v733, %v1181
    %v1246 = vmul.f32 %v734, %v1182
    %v1247 = vmul.f32 %v735, %v1183
    %v1248 = vmul.f32 %v736, %v1184
    %v1249 = vmul.f32 %v737, %v1185
    %v1250 = vmul.f32 %v738, %v1186
    %v1251 = vmul.f32 %v739, %v1187
    %v1252 = vmul.f32 %v740, %v1188
    %v1253 = vmul.f32 %v741, %v1189
    %v1254 = vmul.f32 %v742, %v1190
    %v1255 = vmul.f32 %v743, %v1191
    %v1256 = vmul.f32 %v744, %v1192
    %v1257 = vmul.f32 %v745, %v1193
    %v1258 = vmul.f32 %v746, %v1194
    %v1259 = vmul.f32 %v747, %v1195
    %v1260 = vmul.f32 %v748, %v1196
    %v1261 = vmul.f32 %v749, %v1197
    %v1262 = vmul.f32 %v750, %v1198
    %v1263 = vmul.f32 %v751, %v1199
    %v1264 = vmul.f32 %v752, %v1200
    %v1265 = vmul.f32 %v753, %v1201
    %v1266 = vmul.f32 %v754, %v1202
    %v1267 = vmul.f32 %v755, %v1203
    %v1268 = vmul.f32 %v756, %v1204
    %v1269 = vmul.f32 %v757, %v1205
    %v1270 = vmul.f32 %v758, %v1206
    %v1271 = vmul.f32 %v759, %v1207
    %v1272 = vmul.f32 %v760, %v1208
    %v1273 = vmul.f32 %v761, %v1209
    %v1274 = vmul.f32 %v762, %v1210
    %v1275 = vmul.f32 %v763, %v1211
    %v1276 = vmul.f32 %v764, %v1212
    %v1277 = vmul.f32 %v765, %v1213
    %v1278 = vpack.c.bf16 %v1215, %v1214
    %v1279 = vpack.c.bf16 %v1217, %v1216
    %v1280 = vpack.c.bf16 %v1219, %v1218
    %v1281 = vpack.c.bf16 %v1221, %v1220
    %v1282 = vpack.c.bf16 %v1223, %v1222
    %v1283 = vpack.c.bf16 %v1225, %v1224
    %v1284 = vpack.c.bf16 %v1227, %v1226
    %v1285 = vpack.c.bf16 %v1229, %v1228
    %v1286 = vpack.c.bf16 %v1231, %v1230
    %v1287 = vpack.c.bf16 %v1233, %v1232
    %v1288 = vpack.c.bf16 %v1235, %v1234
    %v1289 = vpack.c.bf16 %v1237, %v1236
    %v1290 = vpack.c.bf16 %v1239, %v1238
    %v1291 = vpack.c.bf16 %v1241, %v1240
    %v1292 = vpack.c.bf16 %v1243, %v1242
    %v1293 = vpack.c.bf16 %v1245, %v1244
    %v1294 = vpack.c.bf16 %v1247, %v1246
    %v1295 = vpack.c.bf16 %v1249, %v1248
    %v1296 = vpack.c.bf16 %v1251, %v1250
    %v1297 = vpack.c.bf16 %v1253, %v1252
    %v1298 = vpack.c.bf16 %v1255, %v1254
    %v1299 = vpack.c.bf16 %v1257, %v1256
    %v1300 = vpack.c.bf16 %v1259, %v1258
    %v1301 = vpack.c.bf16 %v1261, %v1260
    %v1302 = vpack.c.bf16 %v1263, %v1262
    %v1303 = vpack.c.bf16 %v1265, %v1264
    %v1304 = vpack.c.bf16 %v1267, %v1266
    %v1305 = vpack.c.bf16 %v1269, %v1268
    %v1306 = vpack.c.bf16 %v1271, %v1270
    %v1307 = vpack.c.bf16 %v1273, %v1272
    %v1308 = vpack.c.bf16 %v1275, %v1274
    %v1309 = vpack.c.bf16 %v1277, %v1276
    %v1310 = vld [vmem:[#allocation8] sm:$0xf]
    %v1311 = vld [vmem:[#allocation8 + $0x4] sm:$0xf]
    %v1312 = vld [vmem:[#allocation8 + $0x8] sm:$0xf]
    %v1313 = vld [vmem:[#allocation8 + $0xc] sm:$0xf]
    %v1314 = vld [vmem:[#allocation8 + $0x10] sm:$0xf]
    %v1315 = vld [vmem:[#allocation8 + $0x14] sm:$0xf]
    %v1316 = vld [vmem:[#allocation8 + $0x18] sm:$0xf]
    %v1317 = vld [vmem:[#allocation8 + $0x1c] sm:$0xf]
    %v1318 = vld [vmem:[#allocation8 + $0x20] sm:$0xf]
    %v1319 = vld [vmem:[#allocation8 + $0x24] sm:$0xf]
    %v1320 = vld [vmem:[#allocation8 + $0x28] sm:$0xf]
    %v1321 = vld [vmem:[#allocation8 + $0x2c] sm:$0xf]
    %v1322 = vld [vmem:[#allocation8 + $0x30] sm:$0xf]
    %v1323 = vld [vmem:[#allocation8 + $0x34] sm:$0xf]
    %v1324 = vld [vmem:[#allocation8 + $0x38] sm:$0xf]
    %v1325 = vld [vmem:[#allocation8 + $0x3c] sm:$0xf]
    %v1326 = vld [vmem:[#allocation10] sm:$0x1]
    %v1328 = vlaneseq
    %v1329 = vshrl.u32 %v1328, 7
    %v1330 = vsub.s32 0, %v1329
    %v1331 = vrot.slane %v1326, %v1330
    %v1349 = vunpack.c.l.b16 %v1310
    %v1350 = vunpack.c.l.b16 %v1311
    %v1351 = vunpack.c.l.b16 %v1312
    %v1352 = vunpack.c.l.b16 %v1313
    %v1353 = vunpack.c.l.b16 %v1314
    %v1354 = vunpack.c.l.b16 %v1315
    %v1355 = vunpack.c.l.b16 %v1316
    %v1356 = vunpack.c.l.b16 %v1317
    %v1357 = vunpack.c.l.b16 %v1318
    %v1358 = vunpack.c.l.b16 %v1319
    %v1359 = vunpack.c.l.b16 %v1320
    %v1360 = vunpack.c.l.b16 %v1321
    %v1361 = vunpack.c.l.b16 %v1322
    %v1362 = vunpack.c.l.b16 %v1323
    %v1363 = vunpack.c.l.b16 %v1324
    %v1364 = vunpack.c.l.b16 %v1325
    %v1365 = vpack.c.b16 %v1350, %v1349
    %v1366 = vpack.c.b16 %v1352, %v1351
    %v1367 = vpack.c.b16 %v1354, %v1353
    %v1368 = vpack.c.b16 %v1356, %v1355
    %v1369 = vpack.c.b16 %v1358, %v1357
    %v1370 = vpack.c.b16 %v1360, %v1359
    %v1371 = vpack.c.b16 %v1362, %v1361
    %v1372 = vpack.c.b16 %v1364, %v1363
    %1381 = vmatprep.subr.bf16.mxu0 0
    %1382 = vmatpush1.bf16.msra.mxu0 %v1365
    %1383 = vmatprep.subr.bf16.mxu0 0
    %1384 = vmatpush1.bf16.msra.mxu0 %v1366
    %1385 = vmatprep.subr.bf16.mxu0 0
    %1386 = vmatpush1.bf16.msra.mxu0 %v1367
    %1387 = vmatprep.subr.bf16.mxu0 0
    %1388 = vmatpush1.bf16.msra.mxu0 %v1368
    %1389 = vmatprep.subr.bf16.mxu0 0
    %1390 = vmatpush1.bf16.msra.mxu0 %v1369
    %1391 = vmatprep.subr.bf16.mxu0 0
    %1392 = vmatpush1.bf16.msra.mxu0 %v1370
    %1393 = vmatprep.subr.bf16.mxu0 0
    %1394 = vmatpush1.bf16.msra.mxu0 %v1371
    %1395 = vmatprep.subr.bf16.mxu0 0
    %1396 = vmatpush1.bf16.msra.mxu0 %v1372
    %1397 = vmatprep.subr.bf16.mxu0 0
    %1398 = vmatpush1.bf16.msra.mxu0 0
    %1399 = vmatprep.subr.bf16.mxu0 0
    %1400 = vmatpush1.bf16.msra.mxu0 0
    %1401 = vmatprep.subr.bf16.mxu0 0
    %1402 = vmatpush1.bf16.msra.mxu0 0
    %1403 = vmatprep.subr.bf16.mxu0 0
    %1404 = vmatpush1.bf16.msra.mxu0 0
    %1405 = vmatprep.subr.bf16.mxu0 0
    %1406 = vmatpush1.bf16.msra.mxu0 0
    %1407 = vmatprep.subr.bf16.mxu0 0
    %1408 = vmatpush1.bf16.msra.mxu0 0
    %1409 = vmatprep.subr.bf16.mxu0 0
    %1410 = vmatpush1.bf16.msra.mxu0 0
    %1411 = vmatprep.subr.bf16.mxu0 0
    %1412 = vmatpush1.bf16.msra.mxu0 0
    %1413 = vmatprep.mubr.bf16.mxu0 0
    %1414 = vmatmul.mubr.bf16.gmra.mrb[0].mxu0 %v1278
    %v1415 = vpop.f32.mrb[0].mxu0
    %v1416 = vadd.f32 %v1331, %v1415
    %v1417 = vpop.f32.mrb[0].mxu0
    %v1418 = vpop.f32.mrb[0].mxu0
    %v1419 = vadd.f32 %v1331, %v1418
    %v1420 = vpop.f32.mrb[0].mxu0
    %1421 = vmatprep.mubr.bf16.mxu0 0
    %1422 = vmatmul.mubr.bf16.gmra.mrb[0].mxu0 %v1279
    %v1423 = vpop.f32.mrb[0].mxu0
    %v1424 = vadd.f32 %v1331, %v1423
    %v1425 = vpop.f32.mrb[0].mxu0
    %v1426 = vpop.f32.mrb[0].mxu0
    %v1427 = vadd.f32 %v1331, %v1426
    %v1428 = vpop.f32.mrb[0].mxu0
    %1429 = vmatprep.mubr.bf16.mxu0 0
    %1430 = vmatmul.mubr.bf16.gmra.mrb[0].mxu0 %v1280
    %v1431 = vpop.f32.mrb[0].mxu0
    %v1432 = vadd.f32 %v1331, %v1431
    %v1433 = vpop.f32.mrb[0].mxu0
    %v1434 = vpop.f32.mrb[0].mxu0
    %v1435 = vadd.f32 %v1331, %v1434
    %v1436 = vpop.f32.mrb[0].mxu0
    %1437 = vmatprep.mubr.bf16.mxu0 0
    %1438 = vmatmul.mubr.bf16.gmra.mrb[0].mxu0 %v1281
    %v1439 = vpop.f32.mrb[0].mxu0
    %v1440 = vadd.f32 %v1331, %v1439
    %v1441 = vpop.f32.mrb[0].mxu0
    %v1442 = vpop.f32.mrb[0].mxu0
    %v1443 = vadd.f32 %v1331, %v1442
    %v1444 = vpop.f32.mrb[0].mxu0
    %1445 = vmatprep.mubr.bf16.mxu0 0
    %1446 = vmatmul.mubr.bf16.gmra.mrb[0].mxu0 %v1282
    %v1447 = vpop.f32.mrb[0].mxu0
    %v1448 = vadd.f32 %v1331, %v1447
    %v1449 = vpop.f32.mrb[0].mxu0
    %v1450 = vpop.f32.mrb[0].mxu0
    %v1451 = vadd.f32 %v1331, %v1450
    %v1452 = vpop.f32.mrb[0].mxu0
    %1453 = vmatprep.mubr.bf16.mxu0 0
    %1454 = vmatmul.mubr.bf16.gmra.mrb[0].mxu0 %v1283
    %v1455 = vpop.f32.mrb[0].mxu0
    %v1456 = vadd.f32 %v1331, %v1455
    %v1457 = vpop.f32.mrb[0].mxu0
    %v1458 = vpop.f32.mrb[0].mxu0
    %v1459 = vadd.f32 %v1331, %v1458
    %v1460 = vpop.f32.mrb[0].mxu0
    %1461 = vmatprep.mubr.bf16.mxu0 0
    %1462 = vmatmul.mubr.bf16.gmra.mrb[0].mxu0 %v1284
    %v1463 = vpop.f32.mrb[0].mxu0
    %v1464 = vadd.f32 %v1331, %v1463
    %v1465 = vpop.f32.mrb[0].mxu0
    %v1466 = vpop.f32.mrb[0].mxu0
    %v1467 = vadd.f32 %v1331, %v1466
    %v1468 = vpop.f32.mrb[0].mxu0
    %1469 = vmatprep.mubr.bf16.mxu0 0
    %1470 = vmatmul.mubr.bf16.gmra.mrb[0].mxu0 %v1285
    %v1471 = vpop.f32.mrb[0].mxu0
    %v1472 = vadd.f32 %v1331, %v1471
    %v1473 = vpop.f32.mrb[0].mxu0
    %v1474 = vpop.f32.mrb[0].mxu0
    %v1475 = vadd.f32 %v1331, %v1474
    %v1476 = vpop.f32.mrb[0].mxu0
    %1477 = vmatprep.mubr.bf16.mxu0 0
    %1478 = vmatmul.mubr.bf16.gmra.mrb[0].mxu0 %v1286
    %v1479 = vpop.f32.mrb[0].mxu0
    %v1480 = vadd.f32 %v1331, %v1479
    %v1481 = vpop.f32.mrb[0].mxu0
    %v1482 = vpop.f32.mrb[0].mxu0
    %v1483 = vadd.f32 %v1331, %v1482
    %v1484 = vpop.f32.mrb[0].mxu0
    %1485 = vmatprep.mubr.bf16.mxu0 0
    %1486 = vmatmul.mubr.bf16.gmra.mrb[0].mxu0 %v1287
    %v1487 = vpop.f32.mrb[0].mxu0
    %v1488 = vadd.f32 %v1331, %v1487
    %v1489 = vpop.f32.mrb[0].mxu0
    %v1490 = vpop.f32.mrb[0].mxu0
    %v1491 = vadd.f32 %v1331, %v1490
    %v1492 = vpop.f32.mrb[0].mxu0
    %1493 = vmatprep.mubr.bf16.mxu0 0
    %1494 = vmatmul.mubr.bf16.gmra.mrb[0].mxu0 %v1288
    %v1495 = vpop.f32.mrb[0].mxu0
    %v1496 = vadd.f32 %v1331, %v1495
    %v1497 = vpop.f32.mrb[0].mxu0
    %v1498 = vpop.f32.mrb[0].mxu0
    %v1499 = vadd.f32 %v1331, %v1498
    %v1500 = vpop.f32.mrb[0].mxu0
    %1501 = vmatprep.mubr.bf16.mxu0 0
    %1502 = vmatmul.mubr.bf16.gmra.mrb[0].mxu0 %v1289
    %v1503 = vpop.f32.mrb[0].mxu0
    %v1504 = vadd.f32 %v1331, %v1503
    %v1505 = vpop.f32.mrb[0].mxu0
    %v1506 = vpop.f32.mrb[0].mxu0
    %v1507 = vadd.f32 %v1331, %v1506
    %v1508 = vpop.f32.mrb[0].mxu0
    %1509 = vmatprep.mubr.bf16.mxu0 0
    %1510 = vmatmul.mubr.bf16.gmra.mrb[0].mxu0 %v1290
    %v1511 = vpop.f32.mrb[0].mxu0
    %v1512 = vadd.f32 %v1331, %v1511
    %v1513 = vpop.f32.mrb[0].mxu0
    %v1514 = vpop.f32.mrb[0].mxu0
    %v1515 = vadd.f32 %v1331, %v1514
    %v1516 = vpop.f32.mrb[0].mxu0
    %1517 = vmatprep.mubr.bf16.mxu0 0
    %1518 = vmatmul.mubr.bf16.gmra.mrb[0].mxu0 %v1291
    %v1519 = vpop.f32.mrb[0].mxu0
    %v1520 = vadd.f32 %v1331, %v1519
    %v1521 = vpop.f32.mrb[0].mxu0
    %v1522 = vpop.f32.mrb[0].mxu0
    %v1523 = vadd.f32 %v1331, %v1522
    %v1524 = vpop.f32.mrb[0].mxu0
    %1525 = vmatprep.mubr.bf16.mxu0 0
    %1526 = vmatmul.mubr.bf16.gmra.mrb[0].mxu0 %v1292
    %v1527 = vpop.f32.mrb[0].mxu0
    %v1528 = vadd.f32 %v1331, %v1527
    %v1529 = vpop.f32.mrb[0].mxu0
    %v1530 = vpop.f32.mrb[0].mxu0
    %v1531 = vadd.f32 %v1331, %v1530
    %v1532 = vpop.f32.mrb[0].mxu0
    %1533 = vmatprep.mubr.bf16.mxu0 0
    %1534 = vmatmul.mubr.bf16.gmra.mrb[0].mxu0 %v1293
    %v1535 = vpop.f32.mrb[0].mxu0
    %v1536 = vadd.f32 %v1331, %v1535
    %v1537 = vpop.f32.mrb[0].mxu0
    %v1538 = vpop.f32.mrb[0].mxu0
    %v1539 = vadd.f32 %v1331, %v1538
    %v1540 = vpop.f32.mrb[0].mxu0
    %1541 = vmatprep.mubr.bf16.mxu0 0
    %1542 = vmatmul.mubr.bf16.gmra.mrb[0].mxu0 %v1294
    %v1543 = vpop.f32.mrb[0].mxu0
    %v1544 = vadd.f32 %v1331, %v1543
    %v1545 = vpop.f32.mrb[0].mxu0
    %v1546 = vpop.f32.mrb[0].mxu0
    %v1547 = vadd.f32 %v1331, %v1546
    %v1548 = vpop.f32.mrb[0].mxu0
    %1549 = vmatprep.mubr.bf16.mxu0 0
    %1550 = vmatmul.mubr.bf16.gmra.mrb[0].mxu0 %v1295
    %v1551 = vpop.f32.mrb[0].mxu0
    %v1552 = vadd.f32 %v1331, %v1551
    %v1553 = vpop.f32.mrb[0].mxu0
    %v1554 = vpop.f32.mrb[0].mxu0
    %v1555 = vadd.f32 %v1331, %v1554
    %v1556 = vpop.f32.mrb[0].mxu0
    %1557 = vmatprep.mubr.bf16.mxu0 0
    %1558 = vmatmul.mubr.bf16.gmra.mrb[0].mxu0 %v1296
    %v1559 = vpop.f32.mrb[0].mxu0
    %v1560 = vadd.f32 %v1331, %v1559
    %v1561 = vpop.f32.mrb[0].mxu0
    %v1562 = vpop.f32.mrb[0].mxu0
    %v1563 = vadd.f32 %v1331, %v1562
    %v1564 = vpop.f32.mrb[0].mxu0
    %1565 = vmatprep.mubr.bf16.mxu0 0
    %1566 = vmatmul.mubr.bf16.gmra.mrb[0].mxu0 %v1297
    %v1567 = vpop.f32.mrb[0].mxu0
    %v1568 = vadd.f32 %v1331, %v1567
    %v1569 = vpop.f32.mrb[0].mxu0
    %v1570 = vpop.f32.mrb[0].mxu0
    %v1571 = vadd.f32 %v1331, %v1570
    %v1572 = vpop.f32.mrb[0].mxu0
    %1573 = vmatprep.mubr.bf16.mxu0 0
    %1574 = vmatmul.mubr.bf16.gmra.mrb[0].mxu0 %v1298
    %v1575 = vpop.f32.mrb[0].mxu0
    %v1576 = vadd.f32 %v1331, %v1575
    %v1577 = vpop.f32.mrb[0].mxu0
    %v1578 = vpop.f32.mrb[0].mxu0
    %v1579 = vadd.f32 %v1331, %v1578
    %v1580 = vpop.f32.mrb[0].mxu0
    %1581 = vmatprep.mubr.bf16.mxu0 0
    %1582 = vmatmul.mubr.bf16.gmra.mrb[0].mxu0 %v1299
    %v1583 = vpop.f32.mrb[0].mxu0
    %v1584 = vadd.f32 %v1331, %v1583
    %v1585 = vpop.f32.mrb[0].mxu0
    %v1586 = vpop.f32.mrb[0].mxu0
    %v1587 = vadd.f32 %v1331, %v1586
    %v1588 = vpop.f32.mrb[0].mxu0
    %1589 = vmatprep.mubr.bf16.mxu0 0
    %1590 = vmatmul.mubr.bf16.gmra.mrb[0].mxu0 %v1300
    %v1591 = vpop.f32.mrb[0].mxu0
    %v1592 = vadd.f32 %v1331, %v1591
    %v1593 = vpop.f32.mrb[0].mxu0
    %v1594 = vpop.f32.mrb[0].mxu0
    %v1595 = vadd.f32 %v1331, %v1594
    %v1596 = vpop.f32.mrb[0].mxu0
    %1597 = vmatprep.mubr.bf16.mxu0 0
    %1598 = vmatmul.mubr.bf16.gmra.mrb[0].mxu0 %v1301
    %v1599 = vpop.f32.mrb[0].mxu0
    %v1600 = vadd.f32 %v1331, %v1599
    %v1601 = vpop.f32.mrb[0].mxu0
    %v1602 = vpop.f32.mrb[0].mxu0
    %v1603 = vadd.f32 %v1331, %v1602
    %v1604 = vpop.f32.mrb[0].mxu0
    %1605 = vmatprep.mubr.bf16.mxu0 0
    %1606 = vmatmul.mubr.bf16.gmra.mrb[0].mxu0 %v1302
    %v1607 = vpop.f32.mrb[0].mxu0
    %v1608 = vadd.f32 %v1331, %v1607
    %v1609 = vpop.f32.mrb[0].mxu0
    %v1610 = vpop.f32.mrb[0].mxu0
    %v1611 = vadd.f32 %v1331, %v1610
    %v1612 = vpop.f32.mrb[0].mxu0
    %1613 = vmatprep.mubr.bf16.mxu0 0
    %1614 = vmatmul.mubr.bf16.gmra.mrb[0].mxu0 %v1303
    %v1615 = vpop.f32.mrb[0].mxu0
    %v1616 = vadd.f32 %v1331, %v1615
    %v1617 = vpop.f32.mrb[0].mxu0
    %v1618 = vpop.f32.mrb[0].mxu0
    %v1619 = vadd.f32 %v1331, %v1618
    %v1620 = vpop.f32.mrb[0].mxu0
    %1621 = vmatprep.mubr.bf16.mxu0 0
    %1622 = vmatmul.mubr.bf16.gmra.mrb[0].mxu0 %v1304
    %v1623 = vpop.f32.mrb[0].mxu0
    %v1624 = vadd.f32 %v1331, %v1623
    %v1625 = vpop.f32.mrb[0].mxu0
    %v1626 = vpop.f32.mrb[0].mxu0
    %v1627 = vadd.f32 %v1331, %v1626
    %v1628 = vpop.f32.mrb[0].mxu0
    %1629 = vmatprep.mubr.bf16.mxu0 0
    %1630 = vmatmul.mubr.bf16.gmra.mrb[0].mxu0 %v1305
    %v1631 = vpop.f32.mrb[0].mxu0
    %v1632 = vadd.f32 %v1331, %v1631
    %v1633 = vpop.f32.mrb[0].mxu0
    %v1634 = vpop.f32.mrb[0].mxu0
    %v1635 = vadd.f32 %v1331, %v1634
    %v1636 = vpop.f32.mrb[0].mxu0
    %1637 = vmatprep.mubr.bf16.mxu0 0
    %1638 = vmatmul.mubr.bf16.gmra.mrb[0].mxu0 %v1306
    %v1639 = vpop.f32.mrb[0].mxu0
    %v1640 = vadd.f32 %v1331, %v1639
    %v1641 = vpop.f32.mrb[0].mxu0
    %v1642 = vpop.f32.mrb[0].mxu0
    %v1643 = vadd.f32 %v1331, %v1642
    %v1644 = vpop.f32.mrb[0].mxu0
    %1645 = vmatprep.mubr.bf16.mxu0 0
    %1646 = vmatmul.mubr.bf16.gmra.mrb[0].mxu0 %v1307
    %v1647 = vpop.f32.mrb[0].mxu0
    %v1648 = vadd.f32 %v1331, %v1647
    %v1649 = vpop.f32.mrb[0].mxu0
    %v1650 = vpop.f32.mrb[0].mxu0
    %v1651 = vadd.f32 %v1331, %v1650
    %v1652 = vpop.f32.mrb[0].mxu0
    %1653 = vmatprep.mubr.bf16.mxu0 0
    %1654 = vmatmul.mubr.bf16.gmra.mrb[0].mxu0 %v1308
    %v1655 = vpop.f32.mrb[0].mxu0
    %v1656 = vadd.f32 %v1331, %v1655
    %v1657 = vpop.f32.mrb[0].mxu0
    %v1658 = vpop.f32.mrb[0].mxu0
    %v1659 = vadd.f32 %v1331, %v1658
    %v1660 = vpop.f32.mrb[0].mxu0
    %1661 = vmatprep.mubr.bf16.mxu0 0
    %1662 = vmatmul.mubr.bf16.gmra.mrb[0].mxu0 %v1309
    %v1663 = vpop.f32.mrb[0].mxu0
    %v1664 = vadd.f32 %v1331, %v1663
    %v1665 = vpop.f32.mrb[0].mxu0
    %v1666 = vpop.f32.mrb[0].mxu0
    %v1667 = vadd.f32 %v1331, %v1666
    %v1668 = vpop.f32.mrb[0].mxu0
    %1669 = vdwg.mxu0
    %v1670 = vmul.f32 %v1416, 0.5
    %v1671 = vmul.f32 %v1419, 0.5
    %v1672 = vmul.f32 %v1424, 0.5
    %v1673 = vmul.f32 %v1427, 0.5
    %v1674 = vmul.f32 %v1432, 0.5
    %v1675 = vmul.f32 %v1435, 0.5
    %v1676 = vmul.f32 %v1440, 0.5
    %v1677 = vmul.f32 %v1443, 0.5
    %v1678 = vmul.f32 %v1448, 0.5
    %v1679 = vmul.f32 %v1451, 0.5
    %v1680 = vmul.f32 %v1456, 0.5
    %v1681 = vmul.f32 %v1459, 0.5
    %v1682 = vmul.f32 %v1464, 0.5
    %v1683 = vmul.f32 %v1467, 0.5
    %v1684 = vmul.f32 %v1472, 0.5
    %v1685 = vmul.f32 %v1475, 0.5
    %v1686 = vmul.f32 %v1480, 0.5
    %v1687 = vmul.f32 %v1483, 0.5
    %v1688 = vmul.f32 %v1488, 0.5
    %v1689 = vmul.f32 %v1491, 0.5
    %v1690 = vmul.f32 %v1496, 0.5
    %v1691 = vmul.f32 %v1499, 0.5
    %v1692 = vmul.f32 %v1504, 0.5
    %v1693 = vmul.f32 %v1507, 0.5
    %v1694 = vmul.f32 %v1512, 0.5
    %v1695 = vmul.f32 %v1515, 0.5
    %v1696 = vmul.f32 %v1520, 0.5
    %v1697 = vmul.f32 %v1523, 0.5
    %v1698 = vmul.f32 %v1528, 0.5
    %v1699 = vmul.f32 %v1531, 0.5
    %v1700 = vmul.f32 %v1536, 0.5
    %v1701 = vmul.f32 %v1539, 0.5
    %v1702 = vmul.f32 %v1544, 0.5
    %v1703 = vmul.f32 %v1547, 0.5
    %v1704 = vmul.f32 %v1552, 0.5
    %v1705 = vmul.f32 %v1555, 0.5
    %v1706 = vmul.f32 %v1560, 0.5
    %v1707 = vmul.f32 %v1563, 0.5
    %v1708 = vmul.f32 %v1568, 0.5
    %v1709 = vmul.f32 %v1571, 0.5
    %v1710 = vmul.f32 %v1576, 0.5
    %v1711 = vmul.f32 %v1579, 0.5
    %v1712 = vmul.f32 %v1584, 0.5
    %v1713 = vmul.f32 %v1587, 0.5
    %v1714 = vmul.f32 %v1592, 0.5
    %v1715 = vmul.f32 %v1595, 0.5
    %v1716 = vmul.f32 %v1600, 0.5
    %v1717 = vmul.f32 %v1603, 0.5
    %v1718 = vmul.f32 %v1608, 0.5
    %v1719 = vmul.f32 %v1611, 0.5
    %v1720 = vmul.f32 %v1616, 0.5
    %v1721 = vmul.f32 %v1619, 0.5
    %v1722 = vmul.f32 %v1624, 0.5
    %v1723 = vmul.f32 %v1627, 0.5
    %v1724 = vmul.f32 %v1632, 0.5
    %v1725 = vmul.f32 %v1635, 0.5
    %v1726 = vmul.f32 %v1640, 0.5
    %v1727 = vmul.f32 %v1643, 0.5
    %v1728 = vmul.f32 %v1648, 0.5
    %v1729 = vmul.f32 %v1651, 0.5
    %v1730 = vmul.f32 %v1656, 0.5
    %v1731 = vmul.f32 %v1659, 0.5
    %v1732 = vmul.f32 %v1664, 0.5
    %v1733 = vmul.f32 %v1667, 0.5
    %v1734 = vmul.f32 %v1416, 0.044715
    %v1735 = vmul.f32 %v1419, 0.044715
    %v1736 = vmul.f32 %v1424, 0.044715
    %v1737 = vmul.f32 %v1427, 0.044715
    %v1738 = vmul.f32 %v1432, 0.044715
    %v1739 = vmul.f32 %v1435, 0.044715
    %v1740 = vmul.f32 %v1440, 0.044715
    %v1741 = vmul.f32 %v1443, 0.044715
    %v1742 = vmul.f32 %v1448, 0.044715
    %v1743 = vmul.f32 %v1451, 0.044715
    %v1744 = vmul.f32 %v1456, 0.044715
    %v1745 = vmul.f32 %v1459, 0.044715
    %v1746 = vmul.f32 %v1464, 0.044715
    %v1747 = vmul.f32 %v1467, 0.044715
    %v1748 = vmul.f32 %v1472, 0.044715
    %v1749 = vmul.f32 %v1475, 0.044715
    %v1750 = vmul.f32 %v1480, 0.044715
    %v1751 = vmul.f32 %v1483, 0.044715
    %v1752 = vmul.f32 %v1488, 0.044715
    %v1753 = vmul.f32 %v1491, 0.044715
    %v1754 = vmul.f32 %v1496, 0.044715
    %v1755 = vmul.f32 %v1499, 0.044715
    %v1756 = vmul.f32 %v1504, 0.044715
    %v1757 = vmul.f32 %v1507, 0.044715
    %v1758 = vmul.f32 %v1512, 0.044715
    %v1759 = vmul.f32 %v1515, 0.044715
    %v1760 = vmul.f32 %v1520, 0.044715
    %v1761 = vmul.f32 %v1523, 0.044715
    %v1762 = vmul.f32 %v1528, 0.044715
    %v1763 = vmul.f32 %v1531, 0.044715
    %v1764 = vmul.f32 %v1536, 0.044715
    %v1765 = vmul.f32 %v1539, 0.044715
    %v1766 = vmul.f32 %v1544, 0.044715
    %v1767 = vmul.f32 %v1547, 0.044715
    %v1768 = vmul.f32 %v1552, 0.044715
    %v1769 = vmul.f32 %v1555, 0.044715
    %v1770 = vmul.f32 %v1560, 0.044715
    %v1771 = vmul.f32 %v1563, 0.044715
    %v1772 = vmul.f32 %v1568, 0.044715
    %v1773 = vmul.f32 %v1571, 0.044715
    %v1774 = vmul.f32 %v1576, 0.044715
    %v1775 = vmul.f32 %v1579, 0.044715
    %v1776 = vmul.f32 %v1584, 0.044715
    %v1777 = vmul.f32 %v1587, 0.044715
    %v1778 = vmul.f32 %v1592, 0.044715
    %v1779 = vmul.f32 %v1595, 0.044715
    %v1780 = vmul.f32 %v1600, 0.044715
    %v1781 = vmul.f32 %v1603, 0.044715
    %v1782 = vmul.f32 %v1608, 0.044715
    %v1783 = vmul.f32 %v1611, 0.044715
    %v1784 = vmul.f32 %v1616, 0.044715
    %v1785 = vmul.f32 %v1619, 0.044715
    %v1786 = vmul.f32 %v1624, 0.044715
    %v1787 = vmul.f32 %v1627, 0.044715
    %v1788 = vmul.f32 %v1632, 0.044715
    %v1789 = vmul.f32 %v1635, 0.044715
    %v1790 = vmul.f32 %v1640, 0.044715
    %v1791 = vmul.f32 %v1643, 0.044715
    %v1792 = vmul.f32 %v1648, 0.044715
    %v1793 = vmul.f32 %v1651, 0.044715
    %v1794 = vmul.f32 %v1656, 0.044715
    %v1795 = vmul.f32 %v1659, 0.044715
    %v1796 = vmul.f32 %v1664, 0.044715
    %v1797 = vmul.f32 %v1667, 0.044715
    %v1798 = vmul.f32 %v1734, %v1416
    %v1799 = vmul.f32 %v1735, %v1419
    %v1800 = vmul.f32 %v1736, %v1424
    %v1801 = vmul.f32 %v1737, %v1427
    %v1802 = vmul.f32 %v1738, %v1432
    %v1803 = vmul.f32 %v1739, %v1435
    %v1804 = vmul.f32 %v1740, %v1440
    %v1805 = vmul.f32 %v1741, %v1443
    %v1806 = vmul.f32 %v1742, %v1448
    %v1807 = vmul.f32 %v1743, %v1451
    %v1808 = vmul.f32 %v1744, %v1456
    %v1809 = vmul.f32 %v1745, %v1459
    %v1810 = vmul.f32 %v1746, %v1464
    %v1811 = vmul.f32 %v1747, %v1467
    %v1812 = vmul.f32 %v1748, %v1472
    %v1813 = vmul.f32 %v1749, %v1475
    %v1814 = vmul.f32 %v1750, %v1480
    %v1815 = vmul.f32 %v1751, %v1483
    %v1816 = vmul.f32 %v1752, %v1488
    %v1817 = vmul.f32 %v1753, %v1491
    %v1818 = vmul.f32 %v1754, %v1496
    %v1819 = vmul.f32 %v1755, %v1499
    %v1820 = vmul.f32 %v1756, %v1504
    %v1821 = vmul.f32 %v1757, %v1507
    %v1822 = vmul.f32 %v1758, %v1512
    %v1823 = vmul.f32 %v1759, %v1515
    %v1824 = vmul.f32 %v1760, %v1520
    %v1825 = vmul.f32 %v1761, %v1523
    %v1826 = vmul.f32 %v1762, %v1528
    %v1827 = vmul.f32 %v1763, %v1531
    %v1828 = vmul.f32 %v1764, %v1536
    %v1829 = vmul.f32 %v1765, %v1539
    %v1830 = vmul.f32 %v1766, %v1544
    %v1831 = vmul.f32 %v1767, %v1547
    %v1832 = vmul.f32 %v1768, %v1552
    %v1833 = vmul.f32 %v1769, %v1555
    %v1834 = vmul.f32 %v1770, %v1560
    %v1835 = vmul.f32 %v1771, %v1563
    %v1836 = vmul.f32 %v1772, %v1568
    %v1837 = vmul.f32 %v1773, %v1571
    %v1838 = vmul.f32 %v1774, %v1576
    %v1839 = vmul.f32 %v1775, %v1579
    %v1840 = vmul.f32 %v1776, %v1584
    %v1841 = vmul.f32 %v1777, %v1587
    %v1842 = vmul.f32 %v1778, %v1592
    %v1843 = vmul.f32 %v1779, %v1595
    %v1844 = vmul.f32 %v1780, %v1600
    %v1845 = vmul.f32 %v1781, %v1603
    %v1846 = vmul.f32 %v1782, %v1608
    %v1847 = vmul.f32 %v1783, %v1611
    %v1848 = vmul.f32 %v1784, %v1616
    %v1849 = vmul.f32 %v1785, %v1619
    %v1850 = vmul.f32 %v1786, %v1624
    %v1851 = vmul.f32 %v1787, %v1627
    %v1852 = vmul.f32 %v1788, %v1632
    %v1853 = vmul.f32 %v1789, %v1635
    %v1854 = vmul.f32 %v1790, %v1640
    %v1855 = vmul.f32 %v1791, %v1643
    %v1856 = vmul.f32 %v1792, %v1648
    %v1857 = vmul.f32 %v1793, %v1651
    %v1858 = vmul.f32 %v1794, %v1656
    %v1859 = vmul.f32 %v1795, %v1659
    %v1860 = vmul.f32 %v1796, %v1664
    %v1861 = vmul.f32 %v1797, %v1667
    %v1862 = vmul.f32 %v1798, %v1416
    %v1863 = vmul.f32 %v1799, %v1419
    %v1864 = vmul.f32 %v1800, %v1424
    %v1865 = vmul.f32 %v1801, %v1427
    %v1866 = vmul.f32 %v1802, %v1432
    %v1867 = vmul.f32 %v1803, %v1435
    %v1868 = vmul.f32 %v1804, %v1440
    %v1869 = vmul.f32 %v1805, %v1443
    %v1870 = vmul.f32 %v1806, %v1448
    %v1871 = vmul.f32 %v1807, %v1451
    %v1872 = vmul.f32 %v1808, %v1456
    %v1873 = vmul.f32 %v1809, %v1459
    %v1874 = vmul.f32 %v1810, %v1464
    %v1875 = vmul.f32 %v1811, %v1467
    %v1876 = vmul.f32 %v1812, %v1472
    %v1877 = vmul.f32 %v1813, %v1475
    %v1878 = vmul.f32 %v1814, %v1480
    %v1879 = vmul.f32 %v1815, %v1483
    %v1880 = vmul.f32 %v1816, %v1488
    %v1881 = vmul.f32 %v1817, %v1491
    %v1882 = vmul.f32 %v1818, %v1496
    %v1883 = vmul.f32 %v1819, %v1499
    %v1884 = vmul.f32 %v1820, %v1504
    %v1885 = vmul.f32 %v1821, %v1507
    %v1886 = vmul.f32 %v1822, %v1512
    %v1887 = vmul.f32 %v1823, %v1515
    %v1888 = vmul.f32 %v1824, %v1520
    %v1889 = vmul.f32 %v1825, %v1523
    %v1890 = vmul.f32 %v1826, %v1528
    %v1891 = vmul.f32 %v1827, %v1531
    %v1892 = vmul.f32 %v1828, %v1536
    %v1893 = vmul.f32 %v1829, %v1539
    %v1894 = vmul.f32 %v1830, %v1544
    %v1895 = vmul.f32 %v1831, %v1547
    %v1896 = vmul.f32 %v1832, %v1552
    %v1897 = vmul.f32 %v1833, %v1555
    %v1898 = vmul.f32 %v1834, %v1560
    %v1899 = vmul.f32 %v1835, %v1563
    %v1900 = vmul.f32 %v1836, %v1568
    %v1901 = vmul.f32 %v1837, %v1571
    %v1902 = vmul.f32 %v1838, %v1576
    %v1903 = vmul.f32 %v1839, %v1579
    %v1904 = vmul.f32 %v1840, %v1584
    %v1905 = vmul.f32 %v1841, %v1587
    %v1906 = vmul.f32 %v1842, %v1592
    %v1907 = vmul.f32 %v1843, %v1595
    %v1908 = vmul.f32 %v1844, %v1600
    %v1909 = vmul.f32 %v1845, %v1603
    %v1910 = vmul.f32 %v1846, %v1608
    %v1911 = vmul.f32 %v1847, %v1611
    %v1912 = vmul.f32 %v1848, %v1616
    %v1913 = vmul.f32 %v1849, %v1619
    %v1914 = vmul.f32 %v1850, %v1624
    %v1915 = vmul.f32 %v1851, %v1627
    %v1916 = vmul.f32 %v1852, %v1632
    %v1917 = vmul.f32 %v1853, %v1635
    %v1918 = vmul.f32 %v1854, %v1640
    %v1919 = vmul.f32 %v1855, %v1643
    %v1920 = vmul.f32 %v1856, %v1648
    %v1921 = vmul.f32 %v1857, %v1651
    %v1922 = vmul.f32 %v1858, %v1656
    %v1923 = vmul.f32 %v1859, %v1659
    %v1924 = vmul.f32 %v1860, %v1664
    %v1925 = vmul.f32 %v1861, %v1667
    %v1926 = vadd.f32 %v1416, %v1862
    %v1927 = vadd.f32 %v1419, %v1863
    %v1928 = vadd.f32 %v1424, %v1864
    %v1929 = vadd.f32 %v1427, %v1865
    %v1930 = vadd.f32 %v1432, %v1866
    %v1931 = vadd.f32 %v1435, %v1867
    %v1932 = vadd.f32 %v1440, %v1868
    %v1933 = vadd.f32 %v1443, %v1869
    %v1934 = vadd.f32 %v1448, %v1870
    %v1935 = vadd.f32 %v1451, %v1871
    %v1936 = vadd.f32 %v1456, %v1872
    %v1937 = vadd.f32 %v1459, %v1873
    %v1938 = vadd.f32 %v1464, %v1874
    %v1939 = vadd.f32 %v1467, %v1875
    %v1940 = vadd.f32 %v1472, %v1876
    %v1941 = vadd.f32 %v1475, %v1877
    %v1942 = vadd.f32 %v1480, %v1878
    %v1943 = vadd.f32 %v1483, %v1879
    %v1944 = vadd.f32 %v1488, %v1880
    %v1945 = vadd.f32 %v1491, %v1881
    %v1946 = vadd.f32 %v1496, %v1882
    %v1947 = vadd.f32 %v1499, %v1883
    %v1948 = vadd.f32 %v1504, %v1884
    %v1949 = vadd.f32 %v1507, %v1885
    %v1950 = vadd.f32 %v1512, %v1886
    %v1951 = vadd.f32 %v1515, %v1887
    %v1952 = vadd.f32 %v1520, %v1888
    %v1953 = vadd.f32 %v1523, %v1889
    %v1954 = vadd.f32 %v1528, %v1890
    %v1955 = vadd.f32 %v1531, %v1891
    %v1956 = vadd.f32 %v1536, %v1892
    %v1957 = vadd.f32 %v1539, %v1893
    %v1958 = vadd.f32 %v1544, %v1894
    %v1959 = vadd.f32 %v1547, %v1895
    %v1960 = vadd.f32 %v1552, %v1896
    %v1961 = vadd.f32 %v1555, %v1897
    %v1962 = vadd.f32 %v1560, %v1898
    %v1963 = vadd.f32 %v1563, %v1899
    %v1964 = vadd.f32 %v1568, %v1900
    %v1965 = vadd.f32 %v1571, %v1901
    %v1966 = vadd.f32 %v1576, %v1902
    %v1967 = vadd.f32 %v1579, %v1903
    %v1968 = vadd.f32 %v1584, %v1904
    %v1969 = vadd.f32 %v1587, %v1905
    %v1970 = vadd.f32 %v1592, %v1906
    %v1971 = vadd.f32 %v1595, %v1907
    %v1972 = vadd.f32 %v1600, %v1908
    %v1973 = vadd.f32 %v1603, %v1909
    %v1974 = vadd.f32 %v1608, %v1910
    %v1975 = vadd.f32 %v1611, %v1911
    %v1976 = vadd.f32 %v1616, %v1912
    %v1977 = vadd.f32 %v1619, %v1913
    %v1978 = vadd.f32 %v1624, %v1914
    %v1979 = vadd.f32 %v1627, %v1915
    %v1980 = vadd.f32 %v1632, %v1916
    %v1981 = vadd.f32 %v1635, %v1917
    %v1982 = vadd.f32 %v1640, %v1918
    %v1983 = vadd.f32 %v1643, %v1919
    %v1984 = vadd.f32 %v1648, %v1920
    %v1985 = vadd.f32 %v1651, %v1921
    %v1986 = vadd.f32 %v1656, %v1922
    %v1987 = vadd.f32 %v1659, %v1923
    %v1988 = vadd.f32 %v1664, %v1924
    %v1989 = vadd.f32 %v1667, %v1925
    %v1990 = vmul.f32 %v1926, 0.7978846
    %v1991 = vmul.f32 %v1927, 0.7978846
    %v1992 = vmul.f32 %v1928, 0.7978846
    %v1993 = vmul.f32 %v1929, 0.7978846
    %v1994 = vmul.f32 %v1930, 0.7978846
    %v1995 = vmul.f32 %v1931, 0.7978846
    %v1996 = vmul.f32 %v1932, 0.7978846
    %v1997 = vmul.f32 %v1933, 0.7978846
    %v1998 = vmul.f32 %v1934, 0.7978846
    %v1999 = vmul.f32 %v1935, 0.7978846
    %v2000 = vmul.f32 %v1936, 0.7978846
    %v2001 = vmul.f32 %v1937, 0.7978846
    %v2002 = vmul.f32 %v1938, 0.7978846
    %v2003 = vmul.f32 %v1939, 0.7978846
    %v2004 = vmul.f32 %v1940, 0.7978846
    %v2005 = vmul.f32 %v1941, 0.7978846
    %v2006 = vmul.f32 %v1942, 0.7978846
    %v2007 = vmul.f32 %v1943, 0.7978846
    %v2008 = vmul.f32 %v1944, 0.7978846
    %v2009 = vmul.f32 %v1945, 0.7978846
    %v2010 = vmul.f32 %v1946, 0.7978846
    %v2011 = vmul.f32 %v1947, 0.7978846
    %v2012 = vmul.f32 %v1948, 0.7978846
    %v2013 = vmul.f32 %v1949, 0.7978846
    %v2014 = vmul.f32 %v1950, 0.7978846
    %v2015 = vmul.f32 %v1951, 0.7978846
    %v2016 = vmul.f32 %v1952, 0.7978846
    %v2017 = vmul.f32 %v1953, 0.7978846
    %v2018 = vmul.f32 %v1954, 0.7978846
    %v2019 = vmul.f32 %v1955, 0.7978846
    %v2020 = vmul.f32 %v1956, 0.7978846
    %v2021 = vmul.f32 %v1957, 0.7978846
    %v2022 = vmul.f32 %v1958, 0.7978846
    %v2023 = vmul.f32 %v1959, 0.7978846
    %v2024 = vmul.f32 %v1960, 0.7978846
    %v2025 = vmul.f32 %v1961, 0.7978846
    %v2026 = vmul.f32 %v1962, 0.7978846
    %v2027 = vmul.f32 %v1963, 0.7978846
    %v2028 = vmul.f32 %v1964, 0.7978846
    %v2029 = vmul.f32 %v1965, 0.7978846
    %v2030 = vmul.f32 %v1966, 0.7978846
    %v2031 = vmul.f32 %v1967, 0.7978846
    %v2032 = vmul.f32 %v1968, 0.7978846
    %v2033 = vmul.f32 %v1969, 0.7978846
    %v2034 = vmul.f32 %v1970, 0.7978846
    %v2035 = vmul.f32 %v1971, 0.7978846
    %v2036 = vmul.f32 %v1972, 0.7978846
    %v2037 = vmul.f32 %v1973, 0.7978846
    %v2038 = vmul.f32 %v1974, 0.7978846
    %v2039 = vmul.f32 %v1975, 0.7978846
    %v2040 = vmul.f32 %v1976, 0.7978846
    %v2041 = vmul.f32 %v1977, 0.7978846
    %v2042 = vmul.f32 %v1978, 0.7978846
    %v2043 = vmul.f32 %v1979, 0.7978846
    %v2044 = vmul.f32 %v1980, 0.7978846
    %v2045 = vmul.f32 %v1981, 0.7978846
    %v2046 = vmul.f32 %v1982, 0.7978846
    %v2047 = vmul.f32 %v1983, 0.7978846
    %v2048 = vmul.f32 %v1984, 0.7978846
    %v2049 = vmul.f32 %v1985, 0.7978846
    %v2050 = vmul.f32 %v1986, 0.7978846
    %v2051 = vmul.f32 %v1987, 0.7978846
    %v2052 = vmul.f32 %v1988, 0.7978846
    %v2053 = vmul.f32 %v1989, 0.7978846
    %v2054 = vtanh.pop %v1990
    %v2055 = vtanh.pop %v1991
    %v2056 = vtanh.pop %v1992
    %v2057 = vtanh.pop %v1993
    %v2058 = vtanh.pop %v1994
    %v2059 = vtanh.pop %v1995
    %v2060 = vtanh.pop %v1996
    %v2061 = vtanh.pop %v1997
    %v2062 = vtanh.pop %v1998
    %v2063 = vtanh.pop %v1999
    %v2064 = vtanh.pop %v2000
    %v2065 = vtanh.pop %v2001
    %v2066 = vtanh.pop %v2002
    %v2067 = vtanh.pop %v2003
    %v2068 = vtanh.pop %v2004
    %v2069 = vtanh.pop %v2005
    %v2070 = vtanh.pop %v2006
    %v2071 = vtanh.pop %v2007
    %v2072 = vtanh.pop %v2008
    %v2073 = vtanh.pop %v2009
    %v2074 = vtanh.pop %v2010
    %v2075 = vtanh.pop %v2011
    %v2076 = vtanh.pop %v2012
    %v2077 = vtanh.pop %v2013
    %v2078 = vtanh.pop %v2014
    %v2079 = vtanh.pop %v2015
    %v2080 = vtanh.pop %v2016
    %v2081 = vtanh.pop %v2017
    %v2082 = vtanh.pop %v2018
    %v2083 = vtanh.pop %v2019
    %v2084 = vtanh.pop %v2020
    %v2085 = vtanh.pop %v2021
    %v2086 = vtanh.pop %v2022
    %v2087 = vtanh.pop %v2023
    %v2088 = vtanh.pop %v2024
    %v2089 = vtanh.pop %v2025
    %v2090 = vtanh.pop %v2026
    %v2091 = vtanh.pop %v2027
    %v2092 = vtanh.pop %v2028
    %v2093 = vtanh.pop %v2029
    %v2094 = vtanh.pop %v2030
    %v2095 = vtanh.pop %v2031
    %v2096 = vtanh.pop %v2032
    %v2097 = vtanh.pop %v2033
    %v2098 = vtanh.pop %v2034
    %v2099 = vtanh.pop %v2035
    %v2100 = vtanh.pop %v2036
    %v2101 = vtanh.pop %v2037
    %v2102 = vtanh.pop %v2038
    %v2103 = vtanh.pop %v2039
    %v2104 = vtanh.pop %v2040
    %v2105 = vtanh.pop %v2041
    %v2106 = vtanh.pop %v2042
    %v2107 = vtanh.pop %v2043
    %v2108 = vtanh.pop %v2044
    %v2109 = vtanh.pop %v2045
    %v2110 = vtanh.pop %v2046
    %v2111 = vtanh.pop %v2047
    %v2112 = vtanh.pop %v2048
    %v2113 = vtanh.pop %v2049
    %v2114 = vtanh.pop %v2050
    %v2115 = vtanh.pop %v2051
    %v2116 = vtanh.pop %v2052
    %v2117 = vtanh.pop %v2053
    %v2118 = vadd.f32 %v2054, 1.0
    %v2119 = vadd.f32 %v2055, 1.0
    %v2120 = vadd.f32 %v2056, 1.0
    %v2121 = vadd.f32 %v2057, 1.0
    %v2122 = vadd.f32 %v2058, 1.0
    %v2123 = vadd.f32 %v2059, 1.0
    %v2124 = vadd.f32 %v2060, 1.0
    %v2125 = vadd.f32 %v2061, 1.0
    %v2126 = vadd.f32 %v2062, 1.0
    %v2127 = vadd.f32 %v2063, 1.0
    %v2128 = vadd.f32 %v2064, 1.0
    %v2129 = vadd.f32 %v2065, 1.0
    %v2130 = vadd.f32 %v2066, 1.0
    %v2131 = vadd.f32 %v2067, 1.0
    %v2132 = vadd.f32 %v2068, 1.0
    %v2133 = vadd.f32 %v2069, 1.0
    %v2134 = vadd.f32 %v2070, 1.0
    %v2135 = vadd.f32 %v2071, 1.0
    %v2136 = vadd.f32 %v2072, 1.0
    %v2137 = vadd.f32 %v2073, 1.0
    %v2138 = vadd.f32 %v2074, 1.0
    %v2139 = vadd.f32 %v2075, 1.0
    %v2140 = vadd.f32 %v2076, 1.0
    %v2141 = vadd.f32 %v2077, 1.0
    %v2142 = vadd.f32 %v2078, 1.0
    %v2143 = vadd.f32 %v2079, 1.0
    %v2144 = vadd.f32 %v2080, 1.0
    %v2145 = vadd.f32 %v2081, 1.0
    %v2146 = vadd.f32 %v2082, 1.0
    %v2147 = vadd.f32 %v2083, 1.0
    %v2148 = vadd.f32 %v2084, 1.0
    %v2149 = vadd.f32 %v2085, 1.0
    %v2150 = vadd.f32 %v2086, 1.0
    %v2151 = vadd.f32 %v2087, 1.0
    %v2152 = vadd.f32 %v2088, 1.0
    %v2153 = vadd.f32 %v2089, 1.0
    %v2154 = vadd.f32 %v2090, 1.0
    %v2155 = vadd.f32 %v2091, 1.0
    %v2156 = vadd.f32 %v2092, 1.0
    %v2157 = vadd.f32 %v2093, 1.0
    %v2158 = vadd.f32 %v2094, 1.0
    %v2159 = vadd.f32 %v2095, 1.0
    %v2160 = vadd.f32 %v2096, 1.0
    %v2161 = vadd.f32 %v2097, 1.0
    %v2162 = vadd.f32 %v2098, 1.0
    %v2163 = vadd.f32 %v2099, 1.0
    %v2164 = vadd.f32 %v2100, 1.0
    %v2165 = vadd.f32 %v2101, 1.0
    %v2166 = vadd.f32 %v2102, 1.0
    %v2167 = vadd.f32 %v2103, 1.0
    %v2168 = vadd.f32 %v2104, 1.0
    %v2169 = vadd.f32 %v2105, 1.0
    %v2170 = vadd.f32 %v2106, 1.0
    %v2171 = vadd.f32 %v2107, 1.0
    %v2172 = vadd.f32 %v2108, 1.0
    %v2173 = vadd.f32 %v2109, 1.0
    %v2174 = vadd.f32 %v2110, 1.0
    %v2175 = vadd.f32 %v2111, 1.0
    %v2176 = vadd.f32 %v2112, 1.0
    %v2177 = vadd.f32 %v2113, 1.0
    %v2178 = vadd.f32 %v2114, 1.0
    %v2179 = vadd.f32 %v2115, 1.0
    %v2180 = vadd.f32 %v2116, 1.0
    %v2181 = vadd.f32 %v2117, 1.0
    %v2182 = vmul.f32 %v1670, %v2118
    %v2183 = vmul.f32 %v1671, %v2119
    %v2184 = vmul.f32 %v1672, %v2120
    %v2185 = vmul.f32 %v1673, %v2121
    %v2186 = vmul.f32 %v1674, %v2122
    %v2187 = vmul.f32 %v1675, %v2123
    %v2188 = vmul.f32 %v1676, %v2124
    %v2189 = vmul.f32 %v1677, %v2125
    %v2190 = vmul.f32 %v1678, %v2126
    %v2191 = vmul.f32 %v1679, %v2127
    %v2192 = vmul.f32 %v1680, %v2128
    %v2193 = vmul.f32 %v1681, %v2129
    %v2194 = vmul.f32 %v1682, %v2130
    %v2195 = vmul.f32 %v1683, %v2131
    %v2196 = vmul.f32 %v1684, %v2132
    %v2197 = vmul.f32 %v1685, %v2133
    %v2198 = vmul.f32 %v1686, %v2134
    %v2199 = vmul.f32 %v1687, %v2135
    %v2200 = vmul.f32 %v1688, %v2136
    %v2201 = vmul.f32 %v1689, %v2137
    %v2202 = vmul.f32 %v1690, %v2138
    %v2203 = vmul.f32 %v1691, %v2139
    %v2204 = vmul.f32 %v1692, %v2140
    %v2205 = vmul.f32 %v1693, %v2141
    %v2206 = vmul.f32 %v1694, %v2142
    %v2207 = vmul.f32 %v1695, %v2143
    %v2208 = vmul.f32 %v1696, %v2144
    %v2209 = vmul.f32 %v1697, %v2145
    %v2210 = vmul.f32 %v1698, %v2146
    %v2211 = vmul.f32 %v1699, %v2147
    %v2212 = vmul.f32 %v1700, %v2148
    %v2213 = vmul.f32 %v1701, %v2149
    %v2214 = vmul.f32 %v1702, %v2150
    %v2215 = vmul.f32 %v1703, %v2151
    %v2216 = vmul.f32 %v1704, %v2152
    %v2217 = vmul.f32 %v1705, %v2153
    %v2218 = vmul.f32 %v1706, %v2154
    %v2219 = vmul.f32 %v1707, %v2155
    %v2220 = vmul.f32 %v1708, %v2156
    %v2221 = vmul.f32 %v1709, %v2157
    %v2222 = vmul.f32 %v1710, %v2158
    %v2223 = vmul.f32 %v1711, %v2159
    %v2224 = vmul.f32 %v1712, %v2160
    %v2225 = vmul.f32 %v1713, %v2161
    %v2226 = vmul.f32 %v1714, %v2162
    %v2227 = vmul.f32 %v1715, %v2163
    %v2228 = vmul.f32 %v1716, %v2164
    %v2229 = vmul.f32 %v1717, %v2165
    %v2230 = vmul.f32 %v1718, %v2166
    %v2231 = vmul.f32 %v1719, %v2167
    %v2232 = vmul.f32 %v1720, %v2168
    %v2233 = vmul.f32 %v1721, %v2169
    %v2234 = vmul.f32 %v1722, %v2170
    %v2235 = vmul.f32 %v1723, %v2171
    %v2236 = vmul.f32 %v1724, %v2172
    %v2237 = vmul.f32 %v1725, %v2173
    %v2238 = vmul.f32 %v1726, %v2174
    %v2239 = vmul.f32 %v1727, %v2175
    %v2240 = vmul.f32 %v1728, %v2176
    %v2241 = vmul.f32 %v1729, %v2177
    %v2242 = vmul.f32 %v1730, %v2178
    %v2243 = vmul.f32 %v1731, %v2179
    %v2244 = vmul.f32 %v1732, %v2180
    %v2245 = vmul.f32 %v1733, %v2181
    %v2246 = vpack.c.bf16 %v2183, %v2182
    %v2247 = vpack.c.bf16 %v2185, %v2184
    %v2248 = vpack.c.bf16 %v2187, %v2186
    %v2249 = vpack.c.bf16 %v2189, %v2188
    %v2250 = vpack.c.bf16 %v2191, %v2190
    %v2251 = vpack.c.bf16 %v2193, %v2192
    %v2252 = vpack.c.bf16 %v2195, %v2194
    %v2253 = vpack.c.bf16 %v2197, %v2196
    %v2254 = vpack.c.bf16 %v2199, %v2198
    %v2255 = vpack.c.bf16 %v2201, %v2200
    %v2256 = vpack.c.bf16 %v2203, %v2202
    %v2257 = vpack.c.bf16 %v2205, %v2204
    %v2258 = vpack.c.bf16 %v2207, %v2206
    %v2259 = vpack.c.bf16 %v2209, %v2208
    %v2260 = vpack.c.bf16 %v2211, %v2210
    %v2261 = vpack.c.bf16 %v2213, %v2212
    %v2262 = vpack.c.bf16 %v2215, %v2214
    %v2263 = vpack.c.bf16 %v2217, %v2216
    %v2264 = vpack.c.bf16 %v2219, %v2218
    %v2265 = vpack.c.bf16 %v2221, %v2220
    %v2266 = vpack.c.bf16 %v2223, %v2222
    %v2267 = vpack.c.bf16 %v2225, %v2224
    %v2268 = vpack.c.bf16 %v2227, %v2226
    %v2269 = vpack.c.bf16 %v2229, %v2228
    %v2270 = vpack.c.bf16 %v2231, %v2230
    %v2271 = vpack.c.bf16 %v2233, %v2232
    %v2272 = vpack.c.bf16 %v2235, %v2234
    %v2273 = vpack.c.bf16 %v2237, %v2236
    %v2274 = vpack.c.bf16 %v2239, %v2238
    %v2275 = vpack.c.bf16 %v2241, %v2240
    %v2276 = vpack.c.bf16 %v2243, %v2242
    %v2277 = vpack.c.bf16 %v2245, %v2244
    %v2310 = vunpack.c.l.b16 %v2246
    %v2311 = vunpack.c.h.b16 %v2246
    %v2312 = vunpack.c.l.b16 %v2247
    %v2313 = vunpack.c.h.b16 %v2247
    %v2314 = vunpack.c.l.b16 %v2248
    %v2315 = vunpack.c.h.b16 %v2248
    %v2316 = vunpack.c.l.b16 %v2249
    %v2317 = vunpack.c.h.b16 %v2249
    %v2318 = vunpack.c.l.b16 %v2250
    %v2319 = vunpack.c.h.b16 %v2250
    %v2320 = vunpack.c.l.b16 %v2251
    %v2321 = vunpack.c.h.b16 %v2251
    %v2322 = vunpack.c.l.b16 %v2252
    %v2323 = vunpack.c.h.b16 %v2252
    %v2324 = vunpack.c.l.b16 %v2253
    %v2325 = vunpack.c.h.b16 %v2253
    %v2326 = vunpack.c.l.b16 %v2254
    %v2327 = vunpack.c.h.b16 %v2254
    %v2328 = vunpack.c.l.b16 %v2255
    %v2329 = vunpack.c.h.b16 %v2255
    %v2330 = vunpack.c.l.b16 %v2256
    %v2331 = vunpack.c.h.b16 %v2256
    %v2332 = vunpack.c.l.b16 %v2257
    %v2333 = vunpack.c.h.b16 %v2257
    %v2334 = vunpack.c.l.b16 %v2258
    %v2335 = vunpack.c.h.b16 %v2258
    %v2336 = vunpack.c.l.b16 %v2259
    %v2337 = vunpack.c.h.b16 %v2259
    %v2338 = vunpack.c.l.b16 %v2260
    %v2339 = vunpack.c.h.b16 %v2260
    %v2340 = vunpack.c.l.b16 %v2261
    %v2341 = vunpack.c.h.b16 %v2261
    %v2342 = vunpack.c.l.b16 %v2262
    %v2343 = vunpack.c.h.b16 %v2262
    %v2344 = vunpack.c.l.b16 %v2263
    %v2345 = vunpack.c.h.b16 %v2263
    %v2346 = vunpack.c.l.b16 %v2264
    %v2347 = vunpack.c.h.b16 %v2264
    %v2348 = vunpack.c.l.b16 %v2265
    %v2349 = vunpack.c.h.b16 %v2265
    %v2350 = vunpack.c.l.b16 %v2266
    %v2351 = vunpack.c.h.b16 %v2266
    %v2352 = vunpack.c.l.b16 %v2267
    %v2353 = vunpack.c.h.b16 %v2267
    %v2354 = vunpack.c.l.b16 %v2268
    %v2355 = vunpack.c.h.b16 %v2268
    %v2356 = vunpack.c.l.b16 %v2269
    %v2357 = vunpack.c.h.b16 %v2269
    %v2358 = vunpack.c.l.b16 %v2270
    %v2359 = vunpack.c.h.b16 %v2270
    %v2360 = vunpack.c.l.b16 %v2271
    %v2361 = vunpack.c.h.b16 %v2271
    %v2362 = vunpack.c.l.b16 %v2272
    %v2363 = vunpack.c.h.b16 %v2272
    %v2364 = vunpack.c.l.b16 %v2273
    %v2365 = vunpack.c.h.b16 %v2273
    %v2366 = vunpack.c.l.b16 %v2274
    %v2367 = vunpack.c.h.b16 %v2274
    %v2368 = vunpack.c.l.b16 %v2275
    %v2369 = vunpack.c.h.b16 %v2275
    %v2370 = vunpack.c.l.b16 %v2276
    %v2371 = vunpack.c.h.b16 %v2276
    %v2372 = vunpack.c.l.b16 %v2277
    %v2373 = vunpack.c.h.b16 %v2277
    %v2374 = vpack.c.b16 %v2310, %v2310
    %v2375 = vpack.c.b16 %v2311, %v2311
    %v2376 = vpack.c.b16 %v2312, %v2312
    %v2377 = vpack.c.b16 %v2313, %v2313
    %v2378 = vpack.c.b16 %v2314, %v2314
    %v2379 = vpack.c.b16 %v2315, %v2315
    %v2380 = vpack.c.b16 %v2316, %v2316
    %v2381 = vpack.c.b16 %v2317, %v2317
    %v2382 = vpack.c.b16 %v2318, %v2318
    %v2383 = vpack.c.b16 %v2319, %v2319
    %v2384 = vpack.c.b16 %v2320, %v2320
    %v2385 = vpack.c.b16 %v2321, %v2321
    %v2386 = vpack.c.b16 %v2322, %v2322
    %v2387 = vpack.c.b16 %v2323, %v2323
    %v2388 = vpack.c.b16 %v2324, %v2324
    %v2389 = vpack.c.b16 %v2325, %v2325
    %v2390 = vpack.c.b16 %v2326, %v2326
    %v2391 = vpack.c.b16 %v2327, %v2327
    %v2392 = vpack.c.b16 %v2328, %v2328
    %v2393 = vpack.c.b16 %v2329, %v2329
    %v2394 = vpack.c.b16 %v2330, %v2330
    %v2395 = vpack.c.b16 %v2331, %v2331
    %v2396 = vpack.c.b16 %v2332, %v2332
    %v2397 = vpack.c.b16 %v2333, %v2333
    %v2398 = vpack.c.b16 %v2334, %v2334
    %v2399 = vpack.c.b16 %v2335, %v2335
    %v2400 = vpack.c.b16 %v2336, %v2336
    %v2401 = vpack.c.b16 %v2337, %v2337
    %v2402 = vpack.c.b16 %v2338, %v2338
    %v2403 = vpack.c.b16 %v2339, %v2339
    %v2404 = vpack.c.b16 %v2340, %v2340
    %v2405 = vpack.c.b16 %v2341, %v2341
    %v2406 = vpack.c.b16 %v2342, %v2342
    %v2407 = vpack.c.b16 %v2343, %v2343
    %v2408 = vpack.c.b16 %v2344, %v2344
    %v2409 = vpack.c.b16 %v2345, %v2345
    %v2410 = vpack.c.b16 %v2346, %v2346
    %v2411 = vpack.c.b16 %v2347, %v2347
    %v2412 = vpack.c.b16 %v2348, %v2348
    %v2413 = vpack.c.b16 %v2349, %v2349
    %v2414 = vpack.c.b16 %v2350, %v2350
    %v2415 = vpack.c.b16 %v2351, %v2351
    %v2416 = vpack.c.b16 %v2352, %v2352
    %v2417 = vpack.c.b16 %v2353, %v2353
    %v2418 = vpack.c.b16 %v2354, %v2354
    %v2419 = vpack.c.b16 %v2355, %v2355
    %v2420 = vpack.c.b16 %v2356, %v2356
    %v2421 = vpack.c.b16 %v2357, %v2357
    %v2422 = vpack.c.b16 %v2358, %v2358
    %v2423 = vpack.c.b16 %v2359, %v2359
    %v2424 = vpack.c.b16 %v2360, %v2360
    %v2425 = vpack.c.b16 %v2361, %v2361
    %v2426 = vpack.c.b16 %v2362, %v2362
    %v2427 = vpack.c.b16 %v2363, %v2363
    %v2428 = vpack.c.b16 %v2364, %v2364
    %v2429 = vpack.c.b16 %v2365, %v2365
    %v2430 = vpack.c.b16 %v2366, %v2366
    %v2431 = vpack.c.b16 %v2367, %v2367
    %v2432 = vpack.c.b16 %v2368, %v2368
    %v2433 = vpack.c.b16 %v2369, %v2369
    %v2434 = vpack.c.b16 %v2370, %v2370
    %v2435 = vpack.c.b16 %v2371, %v2371
    %v2436 = vpack.c.b16 %v2372, %v2372
    %v2437 = vpack.c.b16 %v2373, %v2373
    %2502 = vst [vmem:[#allocation11] sm:$0xf] %v2374
    %2503 = vst [vmem:[#allocation11 + $0x4] sm:$0xf] %v2375
    %2504 = vst [vmem:[#allocation11 + $0x8] sm:$0xf] %v2376
    %2505 = vst [vmem:[#allocation11 + $0xc] sm:$0xf] %v2377
    %2506 = vst [vmem:[#allocation11 + $0x10] sm:$0xf] %v2378
    %2507 = vst [vmem:[#allocation11 + $0x14] sm:$0xf] %v2379
    %2508 = vst [vmem:[#allocation11 + $0x18] sm:$0xf] %v2380
    %2509 = vst [vmem:[#allocation11 + $0x1c] sm:$0xf] %v2381
    %2510 = vst [vmem:[#allocation11 + $0x20] sm:$0xf] %v2382
    %2511 = vst [vmem:[#allocation11 + $0x24] sm:$0xf] %v2383
    %2512 = vst [vmem:[#allocation11 + $0x28] sm:$0xf] %v2384
    %2513 = vst [vmem:[#allocation11 + $0x2c] sm:$0xf] %v2385
    %2514 = vst [vmem:[#allocation11 + $0x30] sm:$0xf] %v2386
    %2515 = vst [vmem:[#allocation11 + $0x34] sm:$0xf] %v2387
    %2516 = vst [vmem:[#allocation11 + $0x38] sm:$0xf] %v2388
    %2517 = vst [vmem:[#allocation11 + $0x3c] sm:$0xf] %v2389
    %2518 = vst [vmem:[#allocation11 + $0x40] sm:$0xf] %v2390
    %2519 = vst [vmem:[#allocation11 + $0x44] sm:$0xf] %v2391
    %2520 = vst [vmem:[#allocation11 + $0x48] sm:$0xf] %v2392
    %2521 = vst [vmem:[#allocation11 + $0x4c] sm:$0xf] %v2393
    %2522 = vst [vmem:[#allocation11 + $0x50] sm:$0xf] %v2394
    %2523 = vst [vmem:[#allocation11 + $0x54] sm:$0xf] %v2395
    %2524 = vst [vmem:[#allocation11 + $0x58] sm:$0xf] %v2396
    %2525 = vst [vmem:[#allocation11 + $0x5c] sm:$0xf] %v2397
    %2526 = vst [vmem:[#allocation11 + $0x60] sm:$0xf] %v2398
    %2527 = vst [vmem:[#allocation11 + $0x64] sm:$0xf] %v2399
    %2528 = vst [vmem:[#allocation11 + $0x68] sm:$0xf] %v2400
    %2529 = vst [vmem:[#allocation11 + $0x6c] sm:$0xf] %v2401
    %2530 = vst [vmem:[#allocation11 + $0x70] sm:$0xf] %v2402
    %2531 = vst [vmem:[#allocation11 + $0x74] sm:$0xf] %v2403
    %2532 = vst [vmem:[#allocation11 + $0x78] sm:$0xf] %v2404
    %2533 = vst [vmem:[#allocation11 + $0x7c] sm:$0xf] %v2405
    %2534 = vst [vmem:[#allocation11 + $0x80] sm:$0xf] %v2406
    %2535 = vst [vmem:[#allocation11 + $0x84] sm:$0xf] %v2407
    %2536 = vst [vmem:[#allocation11 + $0x88] sm:$0xf] %v2408
    %2537 = vst [vmem:[#allocation11 + $0x8c] sm:$0xf] %v2409
    %2538 = vst [vmem:[#allocation11 + $0x90] sm:$0xf] %v2410
    %2539 = vst [vmem:[#allocation11 + $0x94] sm:$0xf] %v2411
    %2540 = vst [vmem:[#allocation11 + $0x98] sm:$0xf] %v2412
    %2541 = vst [vmem:[#allocation11 + $0x9c] sm:$0xf] %v2413
    %2542 = vst [vmem:[#allocation11 + $0xa0] sm:$0xf] %v2414
    %2543 = vst [vmem:[#allocation11 + $0xa4] sm:$0xf] %v2415
    %2544 = vst [vmem:[#allocation11 + $0xa8] sm:$0xf] %v2416
    %2545 = vst [vmem:[#allocation11 + $0xac] sm:$0xf] %v2417
    %2546 = vst [vmem:[#allocation11 + $0xb0] sm:$0xf] %v2418
    %2547 = vst [vmem:[#allocation11 + $0xb4] sm:$0xf] %v2419
    %2548 = vst [vmem:[#allocation11 + $0xb8] sm:$0xf] %v2420
    %2549 = vst [vmem:[#allocation11 + $0xbc] sm:$0xf] %v2421
    %2550 = vst [vmem:[#allocation11 + $0xc0] sm:$0xf] %v2422
    %2551 = vst [vmem:[#allocation11 + $0xc4] sm:$0xf] %v2423
    %2552 = vst [vmem:[#allocation11 + $0xc8] sm:$0xf] %v2424
    %2553 = vst [vmem:[#allocation11 + $0xcc] sm:$0xf] %v2425
    %2554 = vst [vmem:[#allocation11 + $0xd0] sm:$0xf] %v2426
    %2555 = vst [vmem:[#allocation11 + $0xd4] sm:$0xf] %v2427
    %2556 = vst [vmem:[#allocation11 + $0xd8] sm:$0xf] %v2428
    %2557 = vst [vmem:[#allocation11 + $0xdc] sm:$0xf] %v2429
    %2558 = vst [vmem:[#allocation11 + $0xe0] sm:$0xf] %v2430
    %2559 = vst [vmem:[#allocation11 + $0xe4] sm:$0xf] %v2431
    %2560 = vst [vmem:[#allocation11 + $0xe8] sm:$0xf] %v2432
    %2561 = vst [vmem:[#allocation11 + $0xec] sm:$0xf] %v2433
    %2562 = vst [vmem:[#allocation11 + $0xf0] sm:$0xf] %v2434
    %2563 = vst [vmem:[#allocation11 + $0xf4] sm:$0xf] %v2435
    %2564 = vst [vmem:[#allocation11 + $0xf8] sm:$0xf] %v2436
    %2565 = vst [vmem:[#allocation11 + $0xfc] sm:$0xf] %v2437
    // Predicated region
    $region42: #{tpu_custom_call.1} parent=1 // pred_check
      _
    $region43: #{tpu_custom_call.1} parent=1 // pred_check_branch
      %2567 = sbr.rel (0) target = $region45
    $region44: #{tpu_custom_call.1} parent=1 // pred_region
      %s2569 = ssub.s32 4096, 4096
      %2570 = vsyncadd [#allocation4], %s2569
      %s2571 = sshll.u32 [#allocation11], 4
      %s2572 = int_to_ptr.vmem [resolvable:$true] %s2571
      %2577 = dma.vmem_to_hbm [thread:$0]  %s2572, 4096, %s5, [#allocation4], 64, 64, 4
    $region45: #{tpu_custom_call.1} parent=1 // pred_fallthru
      _
    // Predicated region
    $region46: #{tpu_custom_call.1} parent=1 // pred_check
      _
    $region47: #{tpu_custom_call.1} parent=1 // pred_check_branch
      %2579 = sbr.rel (0) target = $region49
    $region48: #{tpu_custom_call.1} parent=1 // pred_region
      %2580 = dma.done [#allocation4], 4096
    $region49: #{tpu_custom_call.1} parent=1 // pred_fallthru
      _
    %2581 = vsyncpa [#allocation3], 1
    %2582 = vsyncpa [#allocation6], 1
    %2583 = vsyncpa [#allocation9], 1
    %2584 = vsyncpa [#allocation4], 1

</llo_original>
